<compile_context>
chip_gen: v7x
topology: tpu7x:2x2x1
jax: 0.10.0
libtpu: 0.0.40
codegen_flags: <defaults>
</compile_context>

<pallas_src>
import functools

import jax
import jax.numpy as jnp
from jax import lax
from jax.experimental import pallas as pl
from jax.experimental.pallas import tpu as pltpu


# ----------------------------------------------------------------------------
# Pallas kernel: GEMM tile, bf16 operands, f32 accumulation, fused activation
# ----------------------------------------------------------------------------
def _gemm_kernel(x_ref, w_ref, o_ref, *, relu):
    acc = jnp.dot(x_ref[...], w_ref[...], preferred_element_type=jnp.float32)
    if relu:
        acc = jnp.maximum(acc, 0.0)
    o_ref[...] = acc.astype(o_ref.dtype)


def _row_tile(m):
    # Full M for small problems (whole-array block, no padding pass), else 256:
    # x(256,K)+w(K,512)+out tiles stay well under the scoped-VMEM limits on
    # v5e/v6e/v7x at realistic DCGAN widths, and the grid has >1 row tile.
    return m if m <= 256 else 256


def _col_tile(nc):
    # Lane-dense column tile (multiple of 128) that divides the padded width.
    tn = min(512, nc)
    while nc % tn:
        tn -= 128
    return tn


def pallas_gemm(x, w, *, relu, out_dtype=jnp.bfloat16):
    """(M, K) @ (K, Nc) -> (M, Nc): bf16 operands, f32 accumulation, optional
    fused ReLU, bf16 store.  `w` is already bf16 with Nc a multiple of 128
    (prepared once at init)."""
    m, k = x.shape
    k2, nc = w.shape
    assert k == k2 and nc % 128 == 0, (x.shape, w.shape)
    x = x.astype(jnp.bfloat16)

    tm = _row_tile(m)
    mp = pl.cdiv(m, tm) * tm
    if mp != m:                       # fuses with the patch-building gather
        x = jnp.pad(x, ((0, mp - m), (0, 0)))
    tn = _col_tile(nc)

    out = pl.pallas_call(
        functools.partial(_gemm_kernel, relu=relu),
        out_shape=jax.ShapeDtypeStruct((mp, nc), out_dtype),
        grid=(nc // tn, mp // tm),    # columns outermost -> weight tile stays
        in_specs=[                    # resident across the inner row loop
            pl.BlockSpec((tm, k), lambda j, i: (i, 0)),
            # NOTE: when nc // tn == 1 this block index is constant and could
            # be single-buffered (pipeline_mode=pl.Buffered(1)) to save VMEM.
            pl.BlockSpec((k, tn), lambda j, i: (0, j)),
        ],
        out_specs=pl.BlockSpec((tm, tn), lambda j, i: (i, j)),
        compiler_params=pltpu.CompilerParams(
            dimension_semantics=("parallel", "parallel"),
            vmem_limit_bytes=32 * 1024 * 1024),
    )(x, w)
    return out if mp == m else out[:m]


# ----------------------------------------------------------------------------
# ConvTranspose2d layers (PyTorch semantics), NHWC activations
# ----------------------------------------------------------------------------
def convt_1x1_nhwc(x, w_mat, c_out, *, relu):
    """Layer 0: 1x1 spatial input, stride 1, padding 0, k=4 -> plain matmul.
    GEMM columns are (kh, kw, co); output is directly (N, 4, 4, C_out)."""
    n = x.shape[0]
    z = pallas_gemm(x.reshape(n, -1), w_mat, relu=relu)
    return z[:, :16 * c_out].reshape(n, 4, 4, c_out)


def convt_s2_nhwc(x, w_mat, c_out, *, relu):
    """ConvTranspose2d(k=4, stride=2, padding=1) via sub-pixel decomposition.

    Output pixel (2*bh + p - 1, 2*bw + q - 1), phases p,q in {0,1}, is a dense
    2x2 conv over the 1-padded input window rows/cols {bh, bh+1}:
        out = sum_{a,b in {0,1}} x_pad[bh+a, bw+b, :] . w[:, :, 2+p-2a, 2+q-2b]
    One GEMM over patches (N*(H+1)*(W+1), 4*C_in) emits all four phases; a
    single 6-D transpose interleaves them (no col2im scatter-add)."""
    n, h, w, ci = x.shape
    xp = jnp.pad(x.astype(jnp.bfloat16), ((0, 0), (1, 1), (1, 1), (0, 0)))
    patches = jnp.stack(
        [xp[:, a:a + h + 1, b:b + w + 1, :] for a in (0, 1) for b in (0, 1)],
        axis=3)                                    # (N, H+1, W+1, 4, C_in)
    patches = patches.reshape(n * (h + 1) * (w + 1), 4 * ci)
    z = pallas_gemm(patches, w_mat, relu=relu)     # (M, Nc_pad) bf16
    z = z[:, :4 * c_out].reshape(n, h + 1, w + 1, 2, 2, c_out)
    z = z.transpose(0, 1, 3, 2, 4, 5).reshape(n, 2 * h + 2, 2 * w + 2, c_out)
    return z[:, 1:2 * h + 1, 1:2 * w + 1, :]


# ----------------------------------------------------------------------------
# Parameters: init (PyTorch layout) + one-time GEMM relayout
# ----------------------------------------------------------------------------
_CHANNEL_MULTS = (16, 8, 4, 2)


def _pad_lanes(w_mat):
    nc = w_mat.shape[1]
    ncp = ((nc + 127) // 128) * 128
    if ncp != nc:
        w_mat = jnp.pad(w_mat, ((0, 0), (0, ncp - nc)))
    return w_mat


def _subpixel_weight(w):
    """(C_in, C_out, 4, 4) ConvTranspose2d weight -> (4*C_in, 4*C_out) GEMM
    weight: rows ordered (a, b, ci), columns (p, q, co), with
        W[(a,b,ci), (p,q,co)] = w[ci, co, 2+p-2a, 2+q-2b]."""
    ci, co = w.shape[0], w.shape[1]
    blocks = []
    for a in (0, 1):
        for b in (0, 1):
            pq = jnp.stack(
                [jnp.stack([w[:, :, 2 + p - 2 * a, 2 + q - 2 * b]
                            for q in (0, 1)], axis=1)
                 for p in (0, 1)], axis=1)          # (ci, p, q, co)
            blocks.append(pq.reshape(ci, 4 * co))
    return jnp.concatenate(blocks, axis=0)          # (4*ci, 4*co)


def init_generator_params(key, noise_channels, image_channels, features_gen):
    """Raw parameters in PyTorch ConvTranspose2d layout (C_in, C_out, kH, kW)."""
    dims = ([noise_channels] + [features_gen * m for m in _CHANNEL_MULTS]
            + [image_channels])
    keys = jax.random.split(key, 6)
    weights = [0.05 * jax.random.normal(keys[i], (dims[i], dims[i + 1], 4, 4),
                                        jnp.float32) for i in range(5)]
    bias_last = 0.05 * jax.random.normal(keys[5], (image_channels,), jnp.float32)
    return weights, bias_last


def prepare_generator_params(weights):
    """One-time relayout into GEMM form (bf16, lane-padded columns)."""
    w0 = weights[0]
    mats = [_pad_lanes(w0.transpose(0, 2, 3, 1).reshape(w0.shape[0], -1))
            .astype(jnp.bfloat16)]
    for w in weights[1:]:
        mats.append(_pad_lanes(_subpixel_weight(w)).astype(jnp.bfloat16))
    return mats


def make_generator_forward(noise_channels, image_channels, features_gen):
    c_outs = tuple(features_gen * m for m in _CHANNEL_MULTS) + (image_channels,)

    def forward(x, gemm_mats, bias_last):
        """x: (N, noise_channels, 1, 1) NCHW -> (N, image_channels, 64, 64)."""
        n = x.shape[0]
        h = x.reshape(n, 1, 1, noise_channels).astype(jnp.bfloat16)   # NHWC
        h = convt_1x1_nhwc(h, gemm_mats[0], c_outs[0], relu=True)
        for i in (1, 2, 3):
            h = convt_s2_nhwc(h, gemm_mats[i], c_outs[i], relu=True)
        y = convt_s2_nhwc(h, gemm_mats[4], c_outs[4], relu=False)
        y = jnp.tanh(y.astype(jnp.float32) + bias_last)               # ConvT bias + Tanh
        return jnp.transpose(y, (0, 3, 1, 2))                         # NCHW

    return forward


# ----------------------------------------------------------------------------
# XLA transposed-conv reference (bf16 inputs, f32 accumulation) for checking
# ----------------------------------------------------------------------------
def _conv_transpose2d_ref(x_nhwc, w, stride, padding):
    x_nchw = jnp.transpose(x_nhwc, (0, 3, 1, 2)).astype(jnp.bfloat16)
    k = w.shape[2]
    w_corr = jnp.transpose(w[:, :, ::-1, ::-1], (1, 0, 2, 3)).astype(jnp.bfloat16)
    y = lax.conv_general_dilated(
        x_nchw, w_corr, window_strides=(1, 1),
        padding=[(k - 1 - padding, k - 1 - padding)] * 2,
        lhs_dilation=(stride, stride),
        dimension_numbers=("NCHW", "OIHW", "NCHW"),
        preferred_element_type=jnp.float32)
    return jnp.transpose(y, (0, 2, 3, 1))


if __name__ == "__main__":
    key = jax.random.PRNGKey(0)
    noise_channels, image_channels, features_gen = 8, 3, 4
    batch = 2

    k_params, k_x = jax.random.split(key)
    weights, bias_last = init_generator_params(
        k_params, noise_channels, image_channels, features_gen)
    gemm_mats = prepare_generator_params(weights)          # one-time relayout
    x = jax.random.normal(k_x, (batch, noise_channels, 1, 1), jnp.float32)

    forward = jax.jit(
        make_generator_forward(noise_channels, image_channels, features_gen))
    out = jax.block_until_ready(forward(x, gemm_mats, bias_last))

    assert out.shape == (batch, image_channels, 64, 64), out.shape
    assert bool(jnp.all(jnp.isfinite(out)))
    assert bool(jnp.all(jnp.abs(out) <= 1.0 + 1e-6))        # Tanh range

    # Per-layer numerical check (pre-activation) of the Pallas GEMM + phase
    # interleave against the XLA transposed-convolution reference.
    c_outs = tuple(features_gen * m for m in _CHANNEL_MULTS) + (image_channels,)
    strides = (1, 2, 2, 2, 2)
    pads = (0, 1, 1, 1, 1)
    h = x.reshape(batch, 1, 1, noise_channels).astype(jnp.bfloat16)
    for i in range(5):
        if i == 0:
            y = convt_1x1_nhwc(h, gemm_mats[i], c_outs[i], relu=False)
        else:
            y = convt_s2_nhwc(h, gemm_mats[i], c_outs[i], relu=False)
        y = y.astype(jnp.float32)
        y_ref = _conv_transpose2d_ref(h, weights[i], strides[i], pads[i])
        err = float(jnp.max(jnp.abs(y - y_ref)))
        tol = 2e-2 * (float(jnp.max(jnp.abs(y_ref))) + 1e-6)  # bf16 store rounding
        assert err <= tol, (i, err, tol)
        h = jnp.maximum(y, 0.0).astype(jnp.bfloat16) if i < 4 else y

    print("KERNEL_OK")
</pallas_src>

<mosaic_0001>
module attributes {stable_mosaic.version = 11 : i64} {
  func.func @_gemm_kernel(%arg0: i32, %arg1: i32, %arg2: memref<2x8xbf16, #tpu.memory_space<vmem>>, %arg3: memref<8x512xbf16, #tpu.memory_space<vmem>>, %arg4: memref<2x512xbf16, #tpu.memory_space<vmem>>) attributes {dimension_semantics = [#tpu.dimension_semantics<parallel>, #tpu.dimension_semantics<parallel>], iteration_bounds = array<i64: 2, 1>, scalar_prefetch = 0 : i64, scratch_operands = 0 : i64, tpu.core_type = #tpu.core_type<tc>, window_params = [{transform_indices = @transform_0, window_bounds = array<i64: 2, 8>}, {transform_indices = @transform_1, window_bounds = array<i64: 8, 512>}, {transform_indices = @transform_2, window_bounds = array<i64: 2, 512>}]} {
    %c0 = arith.constant 0 : index
    %c0_0 = arith.constant 0 : index
    %0 = vector.load %arg2[%c0, %c0_0] : memref<2x8xbf16, #tpu.memory_space<vmem>>, vector<2x8xbf16>
    %c0_1 = arith.constant 0 : index
    %c0_2 = arith.constant 0 : index
    %1 = vector.load %arg3[%c0_1, %c0_2] : memref<8x512xbf16, #tpu.memory_space<vmem>>, vector<8x512xbf16>
    %cst = arith.constant dense<0.000000e+00> : vector<2x512xf32>
    %2 = tpu.matmul %0, %1, %cst {dimension_numbers = #tpu.dot_dimension_numbers<[1], [0], [0], [1], [0, 0, 1, 1], [], []>} : vector<2x8xbf16>, vector<8x512xbf16>, vector<2x512xf32> -> vector<2x512xf32>
    %cst_3 = arith.constant 0.000000e+00 : f32
    %3 = vector.broadcast %cst_3 : f32 to vector<2x512xf32>
    %4 = arith.maximumf %2, %3 : vector<2x512xf32>
    %5 = arith.truncf %4 : vector<2x512xf32> to vector<2x512xbf16>
    %c0_4 = arith.constant 0 : index
    %c0_5 = arith.constant 0 : index
    %6 = vector.load %arg4[%c0_4, %c0_5] : memref<2x512xbf16, #tpu.memory_space<vmem>>, vector<2x512xbf16>
    tpu.vector_store %arg4[%c0_4, %c0_5], %5 {strides = array<i32>} : memref<2x512xbf16, #tpu.memory_space<vmem>>, vector<2x512xbf16>,
    return
  }
  func.func @transform_0(%arg0: i32, %arg1: i32) -> (i32, i32) {
    %c0_i32 = arith.constant 0 : i32
    %c0_i32_0 = arith.constant 0 : i32
    return %arg1, %c0_i32 : i32, i32
  }
  func.func @transform_1(%arg0: i32, %arg1: i32) -> (i32, i32) {
    %c0_i32 = arith.constant 0 : i32
    %c0_i32_0 = arith.constant 0 : i32
    return %c0_i32, %arg0 : i32, i32
  }
  func.func @transform_2(%arg0: i32, %arg1: i32) -> (i32, i32) {
    %c0_i32 = arith.constant 0 : i32
    return %arg1, %arg0 : i32, i32
  }
}

module attributes {stable_mosaic.version = 11 : i64} {
  func.func @_gemm_kernel(%arg0: i32, %arg1: i32, %arg2: memref<50x256xbf16, #tpu.memory_space<vmem>>, %arg3: memref<256x128xbf16, #tpu.memory_space<vmem>>, %arg4: memref<50x128xbf16, #tpu.memory_space<vmem>>) attributes {dimension_semantics = [#tpu.dimension_semantics<parallel>, #tpu.dimension_semantics<parallel>], iteration_bounds = array<i64: 1, 1>, scalar_prefetch = 0 : i64, scratch_operands = 0 : i64, tpu.core_type = #tpu.core_type<tc>, window_params = [{transform_indices = @transform_0, window_bounds = array<i64: 50, 256>}, {transform_indices = @transform_1, window_bounds = array<i64: 256, 128>}, {transform_indices = @transform_2, window_bounds = array<i64: 50, 128>}]} {
    %c0 = arith.constant 0 : index
    %c0_0 = arith.constant 0 : index
    %0 = vector.load %arg2[%c0, %c0_0] : memref<50x256xbf16, #tpu.memory_space<vmem>>, vector<50x256xbf16>
    %c0_1 = arith.constant 0 : index
    %c0_2 = arith.constant 0 : index
    %1 = vector.load %arg3[%c0_1, %c0_2] : memref<256x128xbf16, #tpu.memory_space<vmem>>, vector<256x128xbf16>
    %cst = arith.constant dense<0.000000e+00> : vector<50x128xf32>
    %2 = tpu.matmul %0, %1, %cst {dimension_numbers = #tpu.dot_dimension_numbers<[1], [0], [0], [1], [0, 0, 1, 1], [], []>} : vector<50x256xbf16>, vector<256x128xbf16>, vector<50x128xf32> -> vector<50x128xf32>
    %cst_3 = arith.constant 0.000000e+00 : f32
    %3 = vector.broadcast %cst_3 : f32 to vector<50x128xf32>
    %4 = arith.maximumf %2, %3 : vector<50x128xf32>
    %5 = arith.truncf %4 : vector<50x128xf32> to vector<50x128xbf16>
    %c0_4 = arith.constant 0 : index
    %c0_5 = arith.constant 0 : index
    %6 = vector.load %arg4[%c0_4, %c0_5] : memref<50x128xbf16, #tpu.memory_space<vmem>>, vector<50x128xbf16>
    tpu.vector_store %arg4[%c0_4, %c0_5], %5 {strides = array<i32>} : memref<50x128xbf16, #tpu.memory_space<vmem>>, vector<50x128xbf16>,
    return
  }
  func.func @transform_0(%arg0: i32, %arg1: i32) -> (i32, i32) {
    %c0_i32 = arith.constant 0 : i32
    %c0_i32_0 = arith.constant 0 : i32
    return %arg1, %c0_i32 : i32, i32
  }
  func.func @transform_1(%arg0: i32, %arg1: i32) -> (i32, i32) {
    %c0_i32 = arith.constant 0 : i32
    %c0_i32_0 = arith.constant 0 : i32
    return %c0_i32, %arg0 : i32, i32
  }
  func.func @transform_2(%arg0: i32, %arg1: i32) -> (i32, i32) {
    %c0_i32 = arith.constant 0 : i32
    return %arg1, %arg0 : i32, i32
  }
}

module attributes {stable_mosaic.version = 11 : i64} {
  func.func @_gemm_kernel(%arg0: i32, %arg1: i32, %arg2: memref<162x128xbf16, #tpu.memory_space<vmem>>, %arg3: memref<128x128xbf16, #tpu.memory_space<vmem>>, %arg4: memref<162x128xbf16, #tpu.memory_space<vmem>>) attributes {dimension_semantics = [#tpu.dimension_semantics<parallel>, #tpu.dimension_semantics<parallel>], iteration_bounds = array<i64: 1, 1>, scalar_prefetch = 0 : i64, scratch_operands = 0 : i64, tpu.core_type = #tpu.core_type<tc>, window_params = [{transform_indices = @transform_0, window_bounds = array<i64: 162, 128>}, {transform_indices = @transform_1, window_bounds = array<i64: 128, 128>}, {transform_indices = @transform_2, window_bounds = array<i64: 162, 128>}]} {
    %c0 = arith.constant 0 : index
    %c0_0 = arith.constant 0 : index
    %0 = vector.load %arg2[%c0, %c0_0] : memref<162x128xbf16, #tpu.memory_space<vmem>>, vector<162x128xbf16>
    %c0_1 = arith.constant 0 : index
    %c0_2 = arith.constant 0 : index
    %1 = vector.load %arg3[%c0_1, %c0_2] : memref<128x128xbf16, #tpu.memory_space<vmem>>, vector<128x128xbf16>
    %cst = arith.constant dense<0.000000e+00> : vector<162x128xf32>
    %2 = tpu.matmul %0, %1, %cst {dimension_numbers = #tpu.dot_dimension_numbers<[1], [0], [0], [1], [0, 0, 1, 1], [], []>} : vector<162x128xbf16>, vector<128x128xbf16>, vector<162x128xf32> -> vector<162x128xf32>
    %cst_3 = arith.constant 0.000000e+00 : f32
    %3 = vector.broadcast %cst_3 : f32 to vector<162x128xf32>
    %4 = arith.maximumf %2, %3 : vector<162x128xf32>
    %5 = arith.truncf %4 : vector<162x128xf32> to vector<162x128xbf16>
    %c0_4 = arith.constant 0 : index
    %c0_5 = arith.constant 0 : index
    %6 = vector.load %arg4[%c0_4, %c0_5] : memref<162x128xbf16, #tpu.memory_space<vmem>>, vector<162x128xbf16>
    tpu.vector_store %arg4[%c0_4, %c0_5], %5 {strides = array<i32>} : memref<162x128xbf16, #tpu.memory_space<vmem>>, vector<162x128xbf16>,
    return
  }
  func.func @transform_0(%arg0: i32, %arg1: i32) -> (i32, i32) {
    %c0_i32 = arith.constant 0 : i32
    %c0_i32_0 = arith.constant 0 : i32
    return %arg1, %c0_i32 : i32, i32
  }
  func.func @transform_1(%arg0: i32, %arg1: i32) -> (i32, i32) {
    %c0_i32 = arith.constant 0 : i32
    %c0_i32_0 = arith.constant 0 : i32
    return %c0_i32, %arg0 : i32, i32
  }
  func.func @transform_2(%arg0: i32, %arg1: i32) -> (i32, i32) {
    %c0_i32 = arith.constant 0 : i32
    return %arg1, %arg0 : i32, i32
  }
}

module attributes {stable_mosaic.version = 11 : i64} {
  func.func @_gemm_kernel(%arg0: i32, %arg1: i32, %arg2: memref<256x64xbf16, #tpu.memory_space<vmem>>, %arg3: memref<64x128xbf16, #tpu.memory_space<vmem>>, %arg4: memref<256x128xbf16, #tpu.memory_space<vmem>>) attributes {dimension_semantics = [#tpu.dimension_semantics<parallel>, #tpu.dimension_semantics<parallel>], iteration_bounds = array<i64: 1, 3>, scalar_prefetch = 0 : i64, scratch_operands = 0 : i64, tpu.core_type = #tpu.core_type<tc>, window_params = [{transform_indices = @transform_0, window_bounds = array<i64: 256, 64>}, {transform_indices = @transform_1, window_bounds = array<i64: 64, 128>}, {transform_indices = @transform_2, window_bounds = array<i64: 256, 128>}]} {
    %c0 = arith.constant 0 : index
    %c0_0 = arith.constant 0 : index
    %0 = vector.load %arg2[%c0, %c0_0] : memref<256x64xbf16, #tpu.memory_space<vmem>>, vector<256x64xbf16>
    %c0_1 = arith.constant 0 : index
    %c0_2 = arith.constant 0 : index
    %1 = vector.load %arg3[%c0_1, %c0_2] : memref<64x128xbf16, #tpu.memory_space<vmem>>, vector<64x128xbf16>
    %cst = arith.constant dense<0.000000e+00> : vector<256x128xf32>
    %2 = tpu.matmul %0, %1, %cst {dimension_numbers = #tpu.dot_dimension_numbers<[1], [0], [0], [1], [0, 0, 1, 1], [], []>} : vector<256x64xbf16>, vector<64x128xbf16>, vector<256x128xf32> -> vector<256x128xf32>
    %cst_3 = arith.constant 0.000000e+00 : f32
    %3 = vector.broadcast %cst_3 : f32 to vector<256x128xf32>
    %4 = arith.maximumf %2, %3 : vector<256x128xf32>
    %5 = arith.truncf %4 : vector<256x128xf32> to vector<256x128xbf16>
    %c0_4 = arith.constant 0 : index
    %c0_5 = arith.constant 0 : index
    %6 = vector.load %arg4[%c0_4, %c0_5] : memref<256x128xbf16, #tpu.memory_space<vmem>>, vector<256x128xbf16>
    tpu.vector_store %arg4[%c0_4, %c0_5], %5 {strides = array<i32>} : memref<256x128xbf16, #tpu.memory_space<vmem>>, vector<256x128xbf16>,
    return
  }
  func.func @transform_0(%arg0: i32, %arg1: i32) -> (i32, i32) {
    %c0_i32 = arith.constant 0 : i32
    %c0_i32_0 = arith.constant 0 : i32
    return %arg1, %c0_i32 : i32, i32
  }
  func.func @transform_1(%arg0: i32, %arg1: i32) -> (i32, i32) {
    %c0_i32 = arith.constant 0 : i32
    %c0_i32_0 = arith.constant 0 : i32
    return %c0_i32, %arg0 : i32, i32
  }
  func.func @transform_2(%arg0: i32, %arg1: i32) -> (i32, i32) {
    %c0_i32 = arith.constant 0 : i32
    return %arg1, %arg0 : i32, i32
  }
}

module attributes {stable_mosaic.version = 11 : i64} {
  func.func @_gemm_kernel(%arg0: i32, %arg1: i32, %arg2: memref<256x32xbf16, #tpu.memory_space<vmem>>, %arg3: memref<32x128xbf16, #tpu.memory_space<vmem>>, %arg4: memref<256x128xbf16, #tpu.memory_space<vmem>>) attributes {dimension_semantics = [#tpu.dimension_semantics<parallel>, #tpu.dimension_semantics<parallel>], iteration_bounds = array<i64: 1, 9>, scalar_prefetch = 0 : i64, scratch_operands = 0 : i64, tpu.core_type = #tpu.core_type<tc>, window_params = [{transform_indices = @transform_0, window_bounds = array<i64: 256, 32>}, {transform_indices = @transform_1, window_bounds = array<i64: 32, 128>}, {transform_indices = @transform_2, window_bounds = array<i64: 256, 128>}]} {
    %c0 = arith.constant 0 : index
    %c0_0 = arith.constant 0 : index
    %0 = vector.load %arg2[%c0, %c0_0] : memref<256x32xbf16, #tpu.memory_space<vmem>>, vector<256x32xbf16>
    %c0_1 = arith.constant 0 : index
    %c0_2 = arith.constant 0 : index
    %1 = vector.load %arg3[%c0_1, %c0_2] : memref<32x128xbf16, #tpu.memory_space<vmem>>, vector<32x128xbf16>
    %cst = arith.constant dense<0.000000e+00> : vector<256x128xf32>
    %2 = tpu.matmul %0, %1, %cst {dimension_numbers = #tpu.dot_dimension_numbers<[1], [0], [0], [1], [0, 0, 1, 1], [], []>} : vector<256x32xbf16>, vector<32x128xbf16>, vector<256x128xf32> -> vector<256x128xf32>
    %3 = arith.truncf %2 : vector<256x128xf32> to vector<256x128xbf16>
    %c0_3 = arith.constant 0 : index
    %c0_4 = arith.constant 0 : index
    %4 = vector.load %arg4[%c0_3, %c0_4] : memref<256x128xbf16, #tpu.memory_space<vmem>>, vector<256x128xbf16>
    tpu.vector_store %arg4[%c0_3, %c0_4], %3 {strides = array<i32>} : memref<256x128xbf16, #tpu.memory_space<vmem>>, vector<256x128xbf16>,
    return
  }
  func.func @transform_0(%arg0: i32, %arg1: i32) -> (i32, i32) {
    %c0_i32 = arith.constant 0 : i32
    %c0_i32_0 = arith.constant 0 : i32
    return %arg1, %c0_i32 : i32, i32
  }
  func.func @transform_1(%arg0: i32, %arg1: i32) -> (i32, i32) {
    %c0_i32 = arith.constant 0 : i32
    %c0_i32_0 = arith.constant 0 : i32
    return %c0_i32, %arg0 : i32, i32
  }
  func.func @transform_2(%arg0: i32, %arg1: i32) -> (i32, i32) {
    %c0_i32 = arith.constant 0 : i32
    return %arg1, %arg0 : i32, i32
  }
}

</mosaic_0001>

<llo_original>
// kernel: forward.5
$region0: #{forward.5}
  #allocation0 [shape = 'u32[]', space=smem, size = 0x4, offset = 0x4, fixed_abs, tag = 'smem constant byte address 0x4 - core index']
  #allocation1 [shape = 'u32[144,128]{1,0:T(1,128)}', space=vmem, size = 0x12000, scoped, tag = 'internal scratch']
  %s0 = inlined_call_operand.vmem [shape: bf16[2,8], index: 0, kind: input, shape index: {}]
  %s1 = inlined_call_operand.hbm [shape: bf16[8,1024], index: 1, kind: input, shape index: {}]
  %s2 = inlined_call_operand.vmem [shape: bf16[2,1024], index: 2, kind: output, shape index: {}]
  %s3 = sld [smem:[#allocation0]]
  $region45: #{forward.5} parent=0
    _
  %s5 = ssub.s32 1, %s3
  %s6 = scalar_select 0, %s5, %s3
  $region1: #{forward.5} parent=0
    #allocation2 [shape = 'u8[16384]{0}', space=vmem, size = 0x4000, scoped, tag = 'input window, operand 1']
    #allocation3 [shape = 's32[2]{0}', space=sflag, size = 0x8, scoped, tag = 'scoped memory for forward.5']
    %7 = vsyncpa [#allocation3], 0
    %s8 = scalar_lea.sflag [#allocation3], 1
    %9 = vsyncpa %s8, 0
    loop: start=0, step=1, limit=4
    $region2: #{forward.5} parent=1 // loop_pre_header
      _
    $region3: #{forward.5} parent=1 // loop_header
      %s11 = sphi 0, %s15
      %p12 = scmp.ge.s32.totalorder %s11, 4
      %s18 = sphi 0, %s30
      %s19 = sphi 0, %s26
      %s20 = sphi 0, %s18
      %s21 = sphi 0, %s19
      %s22 = sphi 0, %s20
      %s23 = sphi 0, %s21
      %s33 = sphi 0, %s35
      %s36 = sphi 0, %s33
      %s37 = sphi 0, %s36
      %s53 = sphi 0, %s37
      %s59 = sphi 0, %s61
      %s62 = sphi 0, %s59
      %s63 = sphi 0, %s62
      %s79 = sphi 0, %s63
      %s87 = sphi 0, %s89
      %s90 = sphi 0, %s87
      %s91 = sphi 0, %s90
      %s107 = sphi 0, %s91
    $region4: #{forward.5} parent=1 // loop_header_branch
      %14 = sbr.rel (%p12) target = $region8
    $region5: #{forward.5} parent=1 // loop_body
      %s16 = ssub.s32 %s11, 1
      %s17 = ssub.s32 %s11, 2
      %s24 = sadd.s32 1, %s19
      %p25 = scmp.ge.s32.totalorder %s24, 1
      %s26 = scalar_select %p25, 0, %s24
      %s27 = sadd.s32 1, %s18
      %s28 = scalar_select %p25, %s27, %s18
      %p29 = scmp.ge.s32.totalorder %s28, 2
      %s30 = scalar_select %p29, 0, %s28
      %s31 = ssub.s32 %s19, %s26
      %p32 = scmp.eq.s32.totalorder %s31, 0
      %s34 = sadd.s32 %s33, 1
      %s35 = scalar_select %p32, %s33, %s34
      %p38 = pneg %p32
      %p39 = scmp.eq.s32.totalorder %s11, 1
      %p40 = por %p38, %p39
      %p41 = scmp.ne.s32.totalorder %s33, %s36
      %p42 = scmp.eq.s32.totalorder %s11, 0
      %p43 = por %p41, %p42
      %p44 = scmp.ne.s32.totalorder %s33, %s36
      %p45 = scmp.eq.s32.totalorder %s16, 1
      %p46 = por %p44, %p45
      %p47 = scmp.ne.s32.totalorder %s36, %s37
      %p48 = scmp.eq.s32.totalorder %s16, 0
      %p49 = por %p47, %p48
      %p50 = scmp.ne.s32.totalorder %s36, %s37
      %p51 = scmp.eq.s32.totalorder %s17, 1
      %p52 = por %p50, %p51
      %p54 = scmp.ne.s32.totalorder %s37, %s53
      %p55 = scmp.eq.s32.totalorder %s17, 0
      %p56 = por %p54, %p55
      %s57 = ssub.s32 %s18, %s30
      %p58 = scmp.eq.s32.totalorder %s57, 0
      %s60 = sadd.s32 %s59, 1
      %s61 = scalar_select %p58, %s59, %s60
      %p64 = pneg %p58
      %p65 = scmp.eq.s32.totalorder %s11, 1
      %p66 = por %p64, %p65
      %p67 = scmp.ne.s32.totalorder %s59, %s62
      %p68 = scmp.eq.s32.totalorder %s11, 0
      %p69 = por %p67, %p68
      %p70 = scmp.ne.s32.totalorder %s59, %s62
      %p71 = scmp.eq.s32.totalorder %s16, 1
      %p72 = por %p70, %p71
      %p73 = scmp.ne.s32.totalorder %s62, %s63
      %p74 = scmp.eq.s32.totalorder %s16, 0
      %p75 = por %p73, %p74
      %p76 = scmp.ne.s32.totalorder %s62, %s63
      %p77 = scmp.eq.s32.totalorder %s17, 1
      %p78 = por %p76, %p77
      %p80 = scmp.ne.s32.totalorder %s63, %s79
      %p81 = scmp.eq.s32.totalorder %s17, 0
      %p82 = por %p80, %p81
      %s83 = ssub.s32 %s19, %s26
      %s84 = ssub.s32 %s18, %s30
      %s85 = sor.u32 %s83, %s84
      %p86 = scmp.eq.s32.totalorder %s85, 0
      %s88 = sadd.s32 %s87, 1
      %s89 = scalar_select %p86, %s87, %s88
      %p92 = pneg %p86
      %p93 = scmp.eq.s32.totalorder %s11, 1
      %p94 = por %p92, %p93
      %p95 = scmp.ne.s32.totalorder %s87, %s90
      %p96 = scmp.eq.s32.totalorder %s11, 0
      %p97 = por %p95, %p96
      %p98 = scmp.ne.s32.totalorder %s87, %s90
      %p99 = scmp.eq.s32.totalorder %s16, 1
      %p100 = por %p98, %p99
      %p101 = scmp.ne.s32.totalorder %s90, %s91
      %p102 = scmp.eq.s32.totalorder %s16, 0
      %p103 = por %p101, %p102
      %p104 = scmp.ne.s32.totalorder %s90, %s91
      %p105 = scmp.eq.s32.totalorder %s17, 1
      %p106 = por %p104, %p105
      %p108 = scmp.ne.s32.totalorder %s91, %s107
      %p109 = scmp.eq.s32.totalorder %s17, 0
      %p110 = por %p108, %p109
      %p111 = scmp.le.s32.totalorder 1, %s11
      %p112 = scmp.lt.s32.totalorder %s11, 3
      %p113 = pnand %p111, %p112
      %p114 = pneg %p113
      // Predicated region
      $region9: #{forward.5} parent=5 // pred_check
        _
      $region10: #{forward.5} parent=5 // pred_check_branch
        %116 = sbr.rel (%p113) target = $region12
      $region11: #{forward.5} parent=5 // pred_region
        %s117 = ssub.s32 %s11, 1
        // Predicated region
        $region13: #{forward.5} parent=11 // pred_check
          %p118 = pneg %p49
        $region14: #{forward.5} parent=11 // pred_check_branch
          %120 = sbr.rel (%p118) target = $region16
        $region15: #{forward.5} parent=11 // pred_region
          %p121 = scmp.lt.s32.totalorder %s21, 0
          %s122 = scalar_select %p121, %s21, 0
          %s123 = scalar_lea.vmem %s0, %s122
        $region16: #{forward.5} parent=11 // pred_fallthru
          _
      $region12: #{forward.5} parent=5 // pred_fallthru
        _
      %p124 = scmp.lt.s32.totalorder %s11, 2
      // Predicated region
      $region17: #{forward.5} parent=5 // pred_check
        %p125 = pneg %p124
      $region18: #{forward.5} parent=5 // pred_check_branch
        %127 = sbr.rel (%p125) target = $region20
      $region19: #{forward.5} parent=5 // pred_region
        // Predicated region
        $region21: #{forward.5} parent=19 // pred_check
          %p128 = pneg %p69
        $region22: #{forward.5} parent=19 // pred_check_branch
          %130 = sbr.rel (%p128) target = $region24
        $region23: #{forward.5} parent=19 // pred_region
          %s131 = sand.u32 %s59, 1
          %s132 = scalar_lea.sflag [#allocation3], %s131
          %s133 = sand.u32 %s59, 1
          %s134 = smul.addr %s133, 16
          %s135 = scalar_lea.vmem [#allocation2], %s134
          %s136 = smul.u32 4, %s18
          %s138 = ssub.s32 256, 256
          %139 = vsyncadd %s132, %s138
          %s140 = smul.addr %s136, 64
          %s141 = scalar_lea.hbm %s1, %s140
          %s143 = sshll.u32 %s135, 4
          %s144 = int_to_ptr.vmem [resolvable:$true] %s143
          %146 = dma.hbm_to_vmem [thread:$0]  %s141, 256, %s144, %s132
        $region24: #{forward.5} parent=19 // pred_fallthru
          _
      $region20: #{forward.5} parent=5 // pred_fallthru
        _
      %p147 = scmp.le.s32.totalorder 1, %s11
      %p148 = scmp.lt.s32.totalorder %s11, 3
      %p149 = pnand %p147, %p148
      %p150 = pneg %p149
      // Predicated region
      $region25: #{forward.5} parent=5 // pred_check
        _
      $region26: #{forward.5} parent=5 // pred_check_branch
        %152 = sbr.rel (%p149) target = $region28
      $region27: #{forward.5} parent=5 // pred_region
        %s153 = ssub.s32 %s11, 1
        %s154 = sand.u32 %s62, 1
        %s155 = scalar_lea.sflag [#allocation3], %s154
        %s156 = sand.u32 %s62, 1
        %s157 = smul.addr %s156, 16
        %s158 = scalar_lea.vmem [#allocation2], %s157
        // Predicated region
        $region29: #{forward.5} parent=27 // pred_check
          %p159 = pneg %p75
        $region30: #{forward.5} parent=27 // pred_check_branch
          %161 = sbr.rel (%p159) target = $region32
        $region31: #{forward.5} parent=27 // pred_region
          %162 = dma.done %s155, 256
        $region32: #{forward.5} parent=27 // pred_fallthru
          _
        %p163 = scmp.lt.s32.totalorder %s21, 0
        %s164 = scalar_select %p163, %s21, 0
        %s165 = scalar_lea.vmem %s0, %s164
        %p166 = pneg %p49
        %p167 = pneg %p46
        %s168 = sand.u32 %s62, 1
        %s169 = scalar_lea.sflag [#allocation3], %s168
        %s170 = sand.u32 %s62, 1
        %s171 = smul.addr %s170, 16
        %s172 = scalar_lea.vmem [#allocation2], %s171
        %p173 = pneg %p75
        %p174 = pneg %p72
        %p175 = pneg %p103
        %p176 = pneg %p100
        %s177 = smul.u32 4, %s20
        %p178 = scmp.lt.s32.totalorder %s21, 0
        %s179 = scalar_select %p178, %s21, 0
        %p180 = scmp.lt.s32.totalorder %s177, 7
        %s181 = scalar_select %p180, %s177, 7
        %s182 = smul.addr %s179, 8
        %s183 = sadd.s32 %s181, %s182
        %s184 = scalar_lea.vmem %s2, %s183
        %p185 = scmp.lt.s32.totalorder %s21, 0
        %s186 = scalar_select %p185, %s21, 0
        %s187 = scalar_lea.vmem %s0, %s186
        %s188 = smul.u32 4, %s20
        %s189 = smul.u32 4, %s20
        %p190 = scmp.lt.s32.totalorder %s21, 0
        %s191 = scalar_select %p190, %s21, 0
        %p192 = scmp.lt.s32.totalorder %s189, 7
        %s193 = scalar_select %p192, %s189, 7
        %s194 = smul.addr %s191, 8
        %s195 = sadd.s32 %s193, %s194
        %s196 = scalar_lea.vmem %s2, %s195
        %s197 = smul.u32 4, %s20
        %v199 = vld [vmem:[%s187] sm:$0x1]
        %v200 = vld [vmem:[%s158] sm:$0xff]
        %v201 = vld [vmem:[%s158 + $0x8] sm:$0xff]
        %v204 = vunpack.c.l.b16 %v200
        %v205 = vunpack.c.h.b16 %v200
        %v206 = vunpack.c.l.b16 %v201
        %v207 = vunpack.c.h.b16 %v201
        %v208 = vpack.c.b16 %v204, %v204
        %v209 = vpack.c.b16 %v205, %v205
        %v210 = vpack.c.b16 %v206, %v206
        %v211 = vpack.c.b16 %v207, %v207
        %vm212 = vcmask 64512
        %v214 = vsel %vm212, %v199, 0
        %vm216 = vcmask 1043456
        %v218 = vsel %vm216, %v208, 0
        %v221 = vsel %vm216, %v209, 0
        %v224 = vsel %vm216, %v210, 0
        %v227 = vsel %vm216, %v211, 0
        %229 = vmatprep.subr.bf16.mxu0 %v221
        %230 = vmatpush1.bf16.msra.mxu0 %v218
        %231 = vmatprep.subr.bf16.mxu0 0
        %232 = vmatpush1.bf16.msra.mxu0 0
        %233 = vmatprep.subr.bf16.mxu0 0
        %234 = vmatpush1.bf16.msra.mxu0 0
        %235 = vmatprep.subr.bf16.mxu0 0
        %236 = vmatpush1.bf16.msra.mxu0 0
        %237 = vmatprep.subr.bf16.mxu0 0
        %238 = vmatpush1.bf16.msra.mxu0 0
        %239 = vmatprep.subr.bf16.mxu0 0
        %240 = vmatpush1.bf16.msra.mxu0 0
        %241 = vmatprep.subr.bf16.mxu0 0
        %242 = vmatpush1.bf16.msra.mxu0 0
        %243 = vmatprep.subr.bf16.mxu0 0
        %244 = vmatpush1.bf16.msra.mxu0 0
        %245 = vmatprep.subr.bf16.mxu0 0
        %246 = vmatpush1.bf16.msra.mxu0 0
        %247 = vmatprep.subr.bf16.mxu0 0
        %248 = vmatpush1.bf16.msra.mxu0 0
        %249 = vmatprep.subr.bf16.mxu0 0
        %250 = vmatpush1.bf16.msra.mxu0 0
        %251 = vmatprep.subr.bf16.mxu0 0
        %252 = vmatpush1.bf16.msra.mxu0 0
        %253 = vmatprep.subr.bf16.mxu0 0
        %254 = vmatpush1.bf16.msra.mxu0 0
        %255 = vmatprep.subr.bf16.mxu0 0
        %256 = vmatpush1.bf16.msra.mxu0 0
        %257 = vmatprep.subr.bf16.mxu0 0
        %258 = vmatpush1.bf16.msra.mxu0 0
        %259 = vmatprep.subr.bf16.mxu0 0
        %260 = vmatpush1.bf16.msra.mxu0 0
        %261 = vmatprep.mubr.bf16.mxu0 0
        %262 = vmatmul.mubr.bf16.gmra.mrb[0].mxu0 %v214
        %v263 = vpop.f32.mrb[0].mxu0
        %v264 = vadd.f32 0.0, %v263
        %v265 = vpop.f32.mrb[0].mxu0
        %v266 = vadd.f32 0.0, %v265
        %v267 = vpop.f32.mrb[0].mxu0
        %v268 = vpop.f32.mrb[0].mxu0
        %269 = vdwg.mxu0
        %270 = vmatprep.subr.bf16.mxu0 %v227
        %271 = vmatpush1.bf16.msra.mxu0 %v224
        %272 = vmatprep.subr.bf16.mxu0 0
        %273 = vmatpush1.bf16.msra.mxu0 0
        %274 = vmatprep.subr.bf16.mxu0 0
        %275 = vmatpush1.bf16.msra.mxu0 0
        %276 = vmatprep.subr.bf16.mxu0 0
        %277 = vmatpush1.bf16.msra.mxu0 0
        %278 = vmatprep.subr.bf16.mxu0 0
        %279 = vmatpush1.bf16.msra.mxu0 0
        %280 = vmatprep.subr.bf16.mxu0 0
        %281 = vmatpush1.bf16.msra.mxu0 0
        %282 = vmatprep.subr.bf16.mxu0 0
        %283 = vmatpush1.bf16.msra.mxu0 0
        %284 = vmatprep.subr.bf16.mxu0 0
        %285 = vmatpush1.bf16.msra.mxu0 0
        %286 = vmatprep.subr.bf16.mxu0 0
        %287 = vmatpush1.bf16.msra.mxu0 0
        %288 = vmatprep.subr.bf16.mxu0 0
        %289 = vmatpush1.bf16.msra.mxu0 0
        %290 = vmatprep.subr.bf16.mxu0 0
        %291 = vmatpush1.bf16.msra.mxu0 0
        %292 = vmatprep.subr.bf16.mxu0 0
        %293 = vmatpush1.bf16.msra.mxu0 0
        %294 = vmatprep.subr.bf16.mxu0 0
        %295 = vmatpush1.bf16.msra.mxu0 0
        %296 = vmatprep.subr.bf16.mxu0 0
        %297 = vmatpush1.bf16.msra.mxu0 0
        %298 = vmatprep.subr.bf16.mxu0 0
        %299 = vmatpush1.bf16.msra.mxu0 0
        %300 = vmatprep.subr.bf16.mxu0 0
        %301 = vmatpush1.bf16.msra.mxu0 0
        %302 = vmatprep.mubr.bf16.mxu0 0
        %303 = vmatmul.mubr.bf16.gmra.mrb[0].mxu0 %v214
        %v304 = vpop.f32.mrb[0].mxu0
        %v305 = vadd.f32 0.0, %v304
        %v306 = vpop.f32.mrb[0].mxu0
        %v307 = vadd.f32 0.0, %v306
        %v308 = vpop.f32.mrb[0].mxu0
        %v309 = vpop.f32.mrb[0].mxu0
        %310 = vdwg.mxu0
        %v311 = vmax.f32 %v264, 0.0
        %v312 = vmax.f32 %v266, 0.0
        %v313 = vmax.f32 %v305, 0.0
        %v314 = vmax.f32 %v307, 0.0
        %v315 = vpack.c.bf16 %v311, %v311
        %v316 = vpack.c.bf16 %v312, %v312
        %v317 = vpack.c.bf16 %v313, %v313
        %v318 = vpack.c.bf16 %v314, %v314
        %v323 = vcombine.low %v315, %v316
        %v324 = vcombine.low %v317, %v318
        %v326 = vunpack.c.l.s4 1966171168
        %v327 = vunpack.c.0.s8 %v326
        %v328 = vlaneseq
        %v329 = vshrl.u32 %v328, 7
        %v330 = vsub.s32 %v327, %v329
        %v331 = vrot.slane %v323, %v330
        %v333 = vunpack.c.l.s4 1966171168
        %v334 = vunpack.c.0.s8 %v333
        %v335 = vlaneseq
        %v336 = vshrl.u32 %v335, 7
        %v337 = vsub.s32 %v334, %v336
        %v338 = vrot.slane %v324, %v337
        %v339 = vcombine.low %v331, %v338
        %v341 = vunpack.c.l.s4 1966171168
        %v342 = vunpack.c.0.s8 %v341
        %v343 = vlaneseq
        %v344 = vshrl.u32 %v343, 7
        %v345 = vsub.s32 %v342, %v344
        %v346 = vrot.slane %v339, %v345
        %348 = vst [vmem:[%s196] sm:$0xf] %v346
        %s349 = smul.u32 4, %s20
        %p350 = scmp.lt.s32.totalorder %s21, 0
        %s351 = scalar_select %p350, %s21, 0
        %p352 = scmp.lt.s32.totalorder %s349, 7
        %s353 = scalar_select %p352, %s349, 7
        %s354 = smul.addr %s351, 8
        %s355 = sadd.s32 %s353, %s354
        %s356 = scalar_lea.vmem %s2, %s355
        // Predicated region
        $region33: #{forward.5} parent=27 // pred_check
          %p357 = pneg %p100
        $region34: #{forward.5} parent=27 // pred_check_branch
          %359 = sbr.rel (%p357) target = $region36
        $region35: #{forward.5} parent=27 // pred_region
          %s360 = smul.u32 4, %s20
        $region36: #{forward.5} parent=27 // pred_fallthru
          _
      $region28: #{forward.5} parent=5 // pred_fallthru
        _
      %p361 = scmp.le.s32.totalorder 2, %s11
      // Predicated region
      $region37: #{forward.5} parent=5 // pred_check
        %p362 = pneg %p361
      $region38: #{forward.5} parent=5 // pred_check_branch
        %364 = sbr.rel (%p362) target = $region40
      $region39: #{forward.5} parent=5 // pred_region
        %s365 = ssub.s32 %s11, 2
        // Predicated region
        $region41: #{forward.5} parent=39 // pred_check
          %p366 = pneg %p106
        $region42: #{forward.5} parent=39 // pred_check_branch
          %368 = sbr.rel (%p366) target = $region44
        $region43: #{forward.5} parent=39 // pred_region
          %s369 = smul.u32 4, %s22
          %p370 = scmp.lt.s32.totalorder %s23, 0
          %s371 = scalar_select %p370, %s23, 0
          %p372 = scmp.lt.s32.totalorder %s369, 7
          %s373 = scalar_select %p372, %s369, 7
          %s374 = smul.addr %s371, 8
          %s375 = sadd.s32 %s373, %s374
          %s376 = scalar_lea.vmem %s2, %s375
        $region44: #{forward.5} parent=39 // pred_fallthru
          _
      $region40: #{forward.5} parent=5 // pred_fallthru
        _
    $region6: #{forward.5} parent=1 // loop_footer
      %s15 = sadd.s32 1, %s11
    $region7: #{forward.5} parent=1 // loop_footer_branch
      %10 = sbr.rel target = $region3
    $region8: #{forward.5} parent=1 // loop_exit
      _
    %377 = vsyncpa [#allocation3], 1
    %s378 = scalar_lea.sflag [#allocation3], 1
    %379 = vsyncpa %s378, 1

// kernel: forward.6
$region0: #{forward.6}
  #allocation0 [shape = 'u32[]', space=smem, size = 0x4, offset = 0x4, fixed_abs, tag = 'smem constant byte address 0x4 - core index']
  #allocation1 [shape = 'u32[144,128]{1,0:T(1,128)}', space=vmem, size = 0x12000, scoped, tag = 'internal scratch']
  %s0 = inlined_call_operand.vmem [shape: bf16[50,256], index: 0, kind: input, shape index: {}]
  %s1 = inlined_call_operand.hbm [shape: bf16[256,128], index: 1, kind: input, shape index: {}]
  %s2 = inlined_call_operand.vmem [shape: bf16[50,128], index: 2, kind: output, shape index: {}]
  %s3 = sld [smem:[#allocation0]]
  $region22: #{forward.6} parent=0
    _
  %s5 = ssub.s32 1, %s3
  %s6 = scalar_select 0, %s5, %s3
  $region1: #{forward.6} parent=0
    #allocation2 [shape = 'u8[65536]{0}', space=vmem, size = 0x10000, scoped, tag = 'input window, operand 1, single buffered']
    #allocation3 [shape = 's32[1]{0}', space=sflag, size = 0x4, scoped, tag = 'scoped memory for forward.6']
    %7 = vsyncpa [#allocation3], 0
    // Predicated region
    $region2: #{forward.6} parent=1 // pred_check
      _
    $region3: #{forward.6} parent=1 // pred_check_branch
      %9 = sbr.rel (0) target = $region5
    $region4: #{forward.6} parent=1 // pred_region
      _
    $region5: #{forward.6} parent=1 // pred_fallthru
      _
    // Predicated region
    $region6: #{forward.6} parent=1 // pred_check
      _
    $region7: #{forward.6} parent=1 // pred_check_branch
      %11 = sbr.rel (0) target = $region9
    $region8: #{forward.6} parent=1 // pred_region
      %s13 = ssub.s32 2048, 2048
      %14 = vsyncadd [#allocation3], %s13
      %s15 = sshll.u32 [#allocation2], 4
      %s16 = int_to_ptr.vmem [resolvable:$true] %s15
      %21 = dma.hbm_to_vmem [thread:$0]  %s1, 2048, %s16, [#allocation3], 64, 64, 4
    $region9: #{forward.6} parent=1 // pred_fallthru
      _
    // Predicated region
    $region10: #{forward.6} parent=1 // pred_check
      _
    $region11: #{forward.6} parent=1 // pred_check_branch
      %23 = sbr.rel (0) target = $region13
    $region12: #{forward.6} parent=1 // pred_region
      %24 = dma.done [#allocation3], 2048
    $region13: #{forward.6} parent=1 // pred_fallthru
      _
    %v26 = vld [vmem:[%s0] sm:$0xff]
    %v27 = vld [vmem:[%s0 + $0x8] sm:$0xff]
    %v28 = vld [vmem:[%s0 + $0x10] sm:$0xff]
    %v29 = vld [vmem:[%s0 + $0x18] sm:$0xff]
    %v30 = vld [vmem:[%s0 + $0x20] sm:$0xff]
    %v31 = vld [vmem:[%s0 + $0x28] sm:$0xff]
    %v32 = vld [vmem:[%s0 + $0x30] sm:$0x11]
    %v33 = vld [vmem:[#allocation2] sm:$0xf]
    %v34 = vld [vmem:[#allocation2 + $0x4] sm:$0xf]
    %v35 = vld [vmem:[#allocation2 + $0x8] sm:$0xf]
    %v36 = vld [vmem:[#allocation2 + $0xc] sm:$0xf]
    %v37 = vld [vmem:[#allocation2 + $0x10] sm:$0xf]
    %v38 = vld [vmem:[#allocation2 + $0x14] sm:$0xf]
    %v39 = vld [vmem:[#allocation2 + $0x18] sm:$0xf]
    %v40 = vld [vmem:[#allocation2 + $0x1c] sm:$0xf]
    %v41 = vld [vmem:[#allocation2 + $0x20] sm:$0xf]
    %v42 = vld [vmem:[#allocation2 + $0x24] sm:$0xf]
    %v43 = vld [vmem:[#allocation2 + $0x28] sm:$0xf]
    %v44 = vld [vmem:[#allocation2 + $0x2c] sm:$0xf]
    %v45 = vld [vmem:[#allocation2 + $0x30] sm:$0xf]
    %v46 = vld [vmem:[#allocation2 + $0x34] sm:$0xf]
    %v47 = vld [vmem:[#allocation2 + $0x38] sm:$0xf]
    %v48 = vld [vmem:[#allocation2 + $0x3c] sm:$0xf]
    %v49 = vld [vmem:[#allocation2 + $0x40] sm:$0xf]
    %v50 = vld [vmem:[#allocation2 + $0x44] sm:$0xf]
    %v51 = vld [vmem:[#allocation2 + $0x48] sm:$0xf]
    %v52 = vld [vmem:[#allocation2 + $0x4c] sm:$0xf]
    %v53 = vld [vmem:[#allocation2 + $0x50] sm:$0xf]
    %v54 = vld [vmem:[#allocation2 + $0x54] sm:$0xf]
    %v55 = vld [vmem:[#allocation2 + $0x58] sm:$0xf]
    %v56 = vld [vmem:[#allocation2 + $0x5c] sm:$0xf]
    %v57 = vld [vmem:[#allocation2 + $0x60] sm:$0xf]
    %v58 = vld [vmem:[#allocation2 + $0x64] sm:$0xf]
    %v59 = vld [vmem:[#allocation2 + $0x68] sm:$0xf]
    %v60 = vld [vmem:[#allocation2 + $0x6c] sm:$0xf]
    %v61 = vld [vmem:[#allocation2 + $0x70] sm:$0xf]
    %v62 = vld [vmem:[#allocation2 + $0x74] sm:$0xf]
    %v63 = vld [vmem:[#allocation2 + $0x78] sm:$0xf]
    %v64 = vld [vmem:[#allocation2 + $0x7c] sm:$0xf]
    %v72 = vunpack.c.l.b16 %v26
    %v73 = vunpack.c.h.b16 %v26
    %v74 = vunpack.c.l.b16 %v27
    %v75 = vunpack.c.h.b16 %v27
    %v76 = vunpack.c.l.b16 %v28
    %v77 = vunpack.c.h.b16 %v28
    %v78 = vunpack.c.l.b16 %v29
    %v79 = vunpack.c.h.b16 %v29
    %v80 = vunpack.c.l.b16 %v30
    %v81 = vunpack.c.h.b16 %v30
    %v82 = vunpack.c.l.b16 %v31
    %v83 = vunpack.c.h.b16 %v31
    %v84 = vunpack.c.l.b16 %v32
    %v85 = vunpack.c.h.b16 %v32
    %v86 = vpack.c.b16 %v74, %v72
    %v87 = vpack.c.b16 %v75, %v73
    %v88 = vpack.c.b16 %v78, %v76
    %v89 = vpack.c.b16 %v79, %v77
    %v90 = vpack.c.b16 %v82, %v80
    %v91 = vpack.c.b16 %v83, %v81
    %v92 = vpack.c.b16 %v84, %v84
    %v93 = vpack.c.b16 %v85, %v85
    %v134 = vunpack.c.l.b16 %v33
    %v135 = vunpack.c.l.b16 %v34
    %v136 = vunpack.c.l.b16 %v35
    %v137 = vunpack.c.l.b16 %v36
    %v138 = vunpack.c.l.b16 %v37
    %v139 = vunpack.c.l.b16 %v38
    %v140 = vunpack.c.l.b16 %v39
    %v141 = vunpack.c.l.b16 %v40
    %v142 = vunpack.c.l.b16 %v41
    %v143 = vunpack.c.l.b16 %v42
    %v144 = vunpack.c.l.b16 %v43
    %v145 = vunpack.c.l.b16 %v44
    %v146 = vunpack.c.l.b16 %v45
    %v147 = vunpack.c.l.b16 %v46
    %v148 = vunpack.c.l.b16 %v47
    %v149 = vunpack.c.l.b16 %v48
    %v150 = vunpack.c.l.b16 %v49
    %v151 = vunpack.c.l.b16 %v50
    %v152 = vunpack.c.l.b16 %v51
    %v153 = vunpack.c.l.b16 %v52
    %v154 = vunpack.c.l.b16 %v53
    %v155 = vunpack.c.l.b16 %v54
    %v156 = vunpack.c.l.b16 %v55
    %v157 = vunpack.c.l.b16 %v56
    %v158 = vunpack.c.l.b16 %v57
    %v159 = vunpack.c.l.b16 %v58
    %v160 = vunpack.c.l.b16 %v59
    %v161 = vunpack.c.l.b16 %v60
    %v162 = vunpack.c.l.b16 %v61
    %v163 = vunpack.c.l.b16 %v62
    %v164 = vunpack.c.l.b16 %v63
    %v165 = vunpack.c.l.b16 %v64
    %v166 = vpack.c.b16 %v135, %v134
    %v167 = vpack.c.b16 %v137, %v136
    %v168 = vpack.c.b16 %v139, %v138
    %v169 = vpack.c.b16 %v141, %v140
    %v170 = vpack.c.b16 %v143, %v142
    %v171 = vpack.c.b16 %v145, %v144
    %v172 = vpack.c.b16 %v147, %v146
    %v173 = vpack.c.b16 %v149, %v148
    %v174 = vpack.c.b16 %v151, %v150
    %v175 = vpack.c.b16 %v153, %v152
    %v176 = vpack.c.b16 %v155, %v154
    %v177 = vpack.c.b16 %v157, %v156
    %v178 = vpack.c.b16 %v159, %v158
    %v179 = vpack.c.b16 %v161, %v160
    %v180 = vpack.c.b16 %v163, %v162
    %v181 = vpack.c.b16 %v165, %v164
    %198 = vmatprep.subr.bf16.mxu0 0
    %199 = vmatpush1.bf16.msra.mxu0 %v166
    %200 = vmatprep.subr.bf16.mxu0 0
    %201 = vmatpush1.bf16.msra.mxu0 %v167
    %202 = vmatprep.subr.bf16.mxu0 0
    %203 = vmatpush1.bf16.msra.mxu0 %v168
    %204 = vmatprep.subr.bf16.mxu0 0
    %205 = vmatpush1.bf16.msra.mxu0 %v169
    %206 = vmatprep.subr.bf16.mxu0 0
    %207 = vmatpush1.bf16.msra.mxu0 %v170
    %208 = vmatprep.subr.bf16.mxu0 0
    %209 = vmatpush1.bf16.msra.mxu0 %v171
    %210 = vmatprep.subr.bf16.mxu0 0
    %211 = vmatpush1.bf16.msra.mxu0 %v172
    %212 = vmatprep.subr.bf16.mxu0 0
    %213 = vmatpush1.bf16.msra.mxu0 %v173
    %214 = vmatprep.subr.bf16.mxu0 0
    %215 = vmatpush1.bf16.msra.mxu0 %v174
    %216 = vmatprep.subr.bf16.mxu0 0
    %217 = vmatpush1.bf16.msra.mxu0 %v175
    %218 = vmatprep.subr.bf16.mxu0 0
    %219 = vmatpush1.bf16.msra.mxu0 %v176
    %220 = vmatprep.subr.bf16.mxu0 0
    %221 = vmatpush1.bf16.msra.mxu0 %v177
    %222 = vmatprep.subr.bf16.mxu0 0
    %223 = vmatpush1.bf16.msra.mxu0 %v178
    %224 = vmatprep.subr.bf16.mxu0 0
    %225 = vmatpush1.bf16.msra.mxu0 %v179
    %226 = vmatprep.subr.bf16.mxu0 0
    %227 = vmatpush1.bf16.msra.mxu0 %v180
    %228 = vmatprep.subr.bf16.mxu0 0
    %229 = vmatpush1.bf16.msra.mxu0 %v181
    %230 = vmatprep.mubr.bf16.mxu0 %v87
    %231 = vmatmul.mubr.bf16.gmra.mrb[0].mxu0 %v86
    %v232 = vpop.f32.mrb[0].mxu0
    %v233 = vadd.f32 0.0, %v232
    %v234 = vpop.f32.mrb[0].mxu0
    %v235 = vpop.f32.mrb[0].mxu0
    %v236 = vadd.f32 0.0, %v235
    %v237 = vpop.f32.mrb[0].mxu0
    %238 = vmatprep.mubr.bf16.mxu0 %v89
    %239 = vmatmul.mubr.bf16.gmra.mrb[0].mxu0 %v88
    %v240 = vpop.f32.mrb[0].mxu0
    %v241 = vadd.f32 0.0, %v240
    %v242 = vpop.f32.mrb[0].mxu0
    %v243 = vpop.f32.mrb[0].mxu0
    %v244 = vadd.f32 0.0, %v243
    %v245 = vpop.f32.mrb[0].mxu0
    %246 = vmatprep.mubr.bf16.mxu0 %v91
    %247 = vmatmul.mubr.bf16.gmra.mrb[0].mxu0 %v90
    %v248 = vpop.f32.mrb[0].mxu0
    %v249 = vadd.f32 0.0, %v248
    %v250 = vpop.f32.mrb[0].mxu0
    %v251 = vpop.f32.mrb[0].mxu0
    %v252 = vadd.f32 0.0, %v251
    %v253 = vpop.f32.mrb[0].mxu0
    %254 = vmatprep.mubr.bf16.mxu0 %v93
    %255 = vmatmul.mubr.bf16.gmra.mrb[0].mxu0 %v92
    %v256 = vpop.f32.mrb[0].mxu0
    %v257 = vadd.f32 0.0, %v256
    %v258 = vpop.f32.mrb[0].mxu0
    %v259 = vpop.f32.mrb[0].mxu0
    %v260 = vpop.f32.mrb[0].mxu0
    %261 = vdwg.mxu0
    %v262 = vmax.f32 %v233, 0.0
    %v263 = vmax.f32 %v236, 0.0
    %v264 = vmax.f32 %v241, 0.0
    %v265 = vmax.f32 %v244, 0.0
    %v266 = vmax.f32 %v249, 0.0
    %v267 = vmax.f32 %v252, 0.0
    %v268 = vmax.f32 %v257, 0.0
    %v269 = vpack.c.bf16 %v263, %v262
    %v270 = vpack.c.bf16 %v265, %v264
    %v271 = vpack.c.bf16 %v267, %v266
    %v272 = vpack.c.bf16 %v268, %v268
    %v277 = vunpack.c.l.b16 %v269
    %v278 = vunpack.c.h.b16 %v269
    %v279 = vunpack.c.l.b16 %v270
    %v280 = vunpack.c.h.b16 %v270
    %v281 = vunpack.c.l.b16 %v271
    %v282 = vunpack.c.h.b16 %v271
    %v283 = vunpack.c.l.b16 %v272
    %v284 = vpack.c.b16 %v277, %v277
    %v285 = vpack.c.b16 %v278, %v278
    %v286 = vpack.c.b16 %v279, %v279
    %v287 = vpack.c.b16 %v280, %v280
    %v288 = vpack.c.b16 %v281, %v281
    %v289 = vpack.c.b16 %v282, %v282
    %v290 = vpack.c.b16 %v283, %v283
    %298 = vst [vmem:[%s2] sm:$0xf] %v284
    %299 = vst [vmem:[%s2 + $0x4] sm:$0xf] %v285
    %300 = vst [vmem:[%s2 + $0x8] sm:$0xf] %v286
    %301 = vst [vmem:[%s2 + $0xc] sm:$0xf] %v287
    %302 = vst [vmem:[%s2 + $0x10] sm:$0xf] %v288
    %303 = vst [vmem:[%s2 + $0x14] sm:$0xf] %v289
    %304 = vst [vmem:[%s2 + $0x18] sm:$0x1] %v290
    // Predicated region
    $region14: #{forward.6} parent=1 // pred_check
      _
    $region15: #{forward.6} parent=1 // pred_check_branch
      %306 = sbr.rel (0) target = $region17
    $region16: #{forward.6} parent=1 // pred_region
      _
    $region17: #{forward.6} parent=1 // pred_fallthru
      _
    // Predicated region
    $region18: #{forward.6} parent=1 // pred_check
      _
    $region19: #{forward.6} parent=1 // pred_check_branch
      %308 = sbr.rel (0) target = $region21
    $region20: #{forward.6} parent=1 // pred_region
      _
    $region21: #{forward.6} parent=1 // pred_fallthru
      _
    %309 = vsyncpa [#allocation3], 1

// kernel: forward.7
$region0: #{forward.7}
  #allocation0 [shape = 'u32[]', space=smem, size = 0x4, offset = 0x4, fixed_abs, tag = 'smem constant byte address 0x4 - core index']
  #allocation1 [shape = 'u32[144,128]{1,0:T(1,128)}', space=vmem, size = 0x12000, scoped, tag = 'internal scratch']
  %s0 = inlined_call_operand.vmem [shape: bf16[162,128], index: 0, kind: input, shape index: {}]
  %s1 = inlined_call_operand.hbm [shape: bf16[128,128], index: 1, kind: input, shape index: {}]
  %s2 = inlined_call_operand.vmem [shape: bf16[162,128], index: 2, kind: output, shape index: {}]
  %s3 = sld [smem:[#allocation0]]
  $region22: #{forward.7} parent=0
    _
  %s5 = ssub.s32 1, %s3
  %s6 = scalar_select 0, %s5, %s3
  $region1: #{forward.7} parent=0
    #allocation2 [shape = 'u8[32768]{0}', space=vmem, size = 0x8000, scoped, tag = 'input window, operand 1, single buffered']
    #allocation3 [shape = 's32[1]{0}', space=sflag, size = 0x4, scoped, tag = 'scoped memory for forward.7']
    %7 = vsyncpa [#allocation3], 0
    // Predicated region
    $region2: #{forward.7} parent=1 // pred_check
      _
    $region3: #{forward.7} parent=1 // pred_check_branch
      %9 = sbr.rel (0) target = $region5
    $region4: #{forward.7} parent=1 // pred_region
      _
    $region5: #{forward.7} parent=1 // pred_fallthru
      _
    // Predicated region
    $region6: #{forward.7} parent=1 // pred_check
      _
    $region7: #{forward.7} parent=1 // pred_check_branch
      %11 = sbr.rel (0) target = $region9
    $region8: #{forward.7} parent=1 // pred_region
      %s13 = ssub.s32 1024, 1024
      %14 = vsyncadd [#allocation3], %s13
      %s15 = sshll.u32 [#allocation2], 4
      %s16 = int_to_ptr.vmem [resolvable:$true] %s15
      %21 = dma.hbm_to_vmem [thread:$0]  %s1, 1024, %s16, [#allocation3], 64, 64, 4
    $region9: #{forward.7} parent=1 // pred_fallthru
      _
    // Predicated region
    $region10: #{forward.7} parent=1 // pred_check
      _
    $region11: #{forward.7} parent=1 // pred_check_branch
      %23 = sbr.rel (0) target = $region13
    $region12: #{forward.7} parent=1 // pred_region
      %24 = dma.done [#allocation3], 1024
    $region13: #{forward.7} parent=1 // pred_fallthru
      _
    %v26 = vld [vmem:[%s0] sm:$0xf]
    %v27 = vld [vmem:[%s0 + $0x4] sm:$0xf]
    %v28 = vld [vmem:[%s0 + $0x8] sm:$0xf]
    %v29 = vld [vmem:[%s0 + $0xc] sm:$0xf]
    %v30 = vld [vmem:[%s0 + $0x10] sm:$0xf]
    %v31 = vld [vmem:[%s0 + $0x14] sm:$0xf]
    %v32 = vld [vmem:[%s0 + $0x18] sm:$0xf]
    %v33 = vld [vmem:[%s0 + $0x1c] sm:$0xf]
    %v34 = vld [vmem:[%s0 + $0x20] sm:$0xf]
    %v35 = vld [vmem:[%s0 + $0x24] sm:$0xf]
    %v36 = vld [vmem:[%s0 + $0x28] sm:$0xf]
    %v37 = vld [vmem:[%s0 + $0x2c] sm:$0xf]
    %v38 = vld [vmem:[%s0 + $0x30] sm:$0xf]
    %v39 = vld [vmem:[%s0 + $0x34] sm:$0xf]
    %v40 = vld [vmem:[%s0 + $0x38] sm:$0xf]
    %v41 = vld [vmem:[%s0 + $0x3c] sm:$0xf]
    %v42 = vld [vmem:[%s0 + $0x40] sm:$0xf]
    %v43 = vld [vmem:[%s0 + $0x44] sm:$0xf]
    %v44 = vld [vmem:[%s0 + $0x48] sm:$0xf]
    %v45 = vld [vmem:[%s0 + $0x4c] sm:$0xf]
    %v46 = vld [vmem:[%s0 + $0x50] sm:$0x1]
    %v47 = vld [vmem:[#allocation2] sm:$0xf]
    %v48 = vld [vmem:[#allocation2 + $0x4] sm:$0xf]
    %v49 = vld [vmem:[#allocation2 + $0x8] sm:$0xf]
    %v50 = vld [vmem:[#allocation2 + $0xc] sm:$0xf]
    %v51 = vld [vmem:[#allocation2 + $0x10] sm:$0xf]
    %v52 = vld [vmem:[#allocation2 + $0x14] sm:$0xf]
    %v53 = vld [vmem:[#allocation2 + $0x18] sm:$0xf]
    %v54 = vld [vmem:[#allocation2 + $0x1c] sm:$0xf]
    %v55 = vld [vmem:[#allocation2 + $0x20] sm:$0xf]
    %v56 = vld [vmem:[#allocation2 + $0x24] sm:$0xf]
    %v57 = vld [vmem:[#allocation2 + $0x28] sm:$0xf]
    %v58 = vld [vmem:[#allocation2 + $0x2c] sm:$0xf]
    %v59 = vld [vmem:[#allocation2 + $0x30] sm:$0xf]
    %v60 = vld [vmem:[#allocation2 + $0x34] sm:$0xf]
    %v61 = vld [vmem:[#allocation2 + $0x38] sm:$0xf]
    %v62 = vld [vmem:[#allocation2 + $0x3c] sm:$0xf]
    %v84 = vunpack.c.l.b16 %v26
    %v85 = vunpack.c.l.b16 %v27
    %v86 = vunpack.c.l.b16 %v28
    %v87 = vunpack.c.l.b16 %v29
    %v88 = vunpack.c.l.b16 %v30
    %v89 = vunpack.c.l.b16 %v31
    %v90 = vunpack.c.l.b16 %v32
    %v91 = vunpack.c.l.b16 %v33
    %v92 = vunpack.c.l.b16 %v34
    %v93 = vunpack.c.l.b16 %v35
    %v94 = vunpack.c.l.b16 %v36
    %v95 = vunpack.c.l.b16 %v37
    %v96 = vunpack.c.l.b16 %v38
    %v97 = vunpack.c.l.b16 %v39
    %v98 = vunpack.c.l.b16 %v40
    %v99 = vunpack.c.l.b16 %v41
    %v100 = vunpack.c.l.b16 %v42
    %v101 = vunpack.c.l.b16 %v43
    %v102 = vunpack.c.l.b16 %v44
    %v103 = vunpack.c.l.b16 %v45
    %v104 = vunpack.c.l.b16 %v46
    %v105 = vpack.c.b16 %v85, %v84
    %v106 = vpack.c.b16 %v87, %v86
    %v107 = vpack.c.b16 %v89, %v88
    %v108 = vpack.c.b16 %v91, %v90
    %v109 = vpack.c.b16 %v93, %v92
    %v110 = vpack.c.b16 %v95, %v94
    %v111 = vpack.c.b16 %v97, %v96
    %v112 = vpack.c.b16 %v99, %v98
    %v113 = vpack.c.b16 %v101, %v100
    %v114 = vpack.c.b16 %v103, %v102
    %v115 = vpack.c.b16 %v104, %v104
    %v143 = vunpack.c.l.b16 %v47
    %v144 = vunpack.c.l.b16 %v48
    %v145 = vunpack.c.l.b16 %v49
    %v146 = vunpack.c.l.b16 %v50
    %v147 = vunpack.c.l.b16 %v51
    %v148 = vunpack.c.l.b16 %v52
    %v149 = vunpack.c.l.b16 %v53
    %v150 = vunpack.c.l.b16 %v54
    %v151 = vunpack.c.l.b16 %v55
    %v152 = vunpack.c.l.b16 %v56
    %v153 = vunpack.c.l.b16 %v57
    %v154 = vunpack.c.l.b16 %v58
    %v155 = vunpack.c.l.b16 %v59
    %v156 = vunpack.c.l.b16 %v60
    %v157 = vunpack.c.l.b16 %v61
    %v158 = vunpack.c.l.b16 %v62
    %v159 = vpack.c.b16 %v144, %v143
    %v160 = vpack.c.b16 %v146, %v145
    %v161 = vpack.c.b16 %v148, %v147
    %v162 = vpack.c.b16 %v150, %v149
    %v163 = vpack.c.b16 %v152, %v151
    %v164 = vpack.c.b16 %v154, %v153
    %v165 = vpack.c.b16 %v156, %v155
    %v166 = vpack.c.b16 %v158, %v157
    %175 = vmatprep.subr.bf16.mxu0 0
    %176 = vmatpush1.bf16.msra.mxu0 %v159
    %177 = vmatprep.subr.bf16.mxu0 0
    %178 = vmatpush1.bf16.msra.mxu0 %v160
    %179 = vmatprep.subr.bf16.mxu0 0
    %180 = vmatpush1.bf16.msra.mxu0 %v161
    %181 = vmatprep.subr.bf16.mxu0 0
    %182 = vmatpush1.bf16.msra.mxu0 %v162
    %183 = vmatprep.subr.bf16.mxu0 0
    %184 = vmatpush1.bf16.msra.mxu0 %v163
    %185 = vmatprep.subr.bf16.mxu0 0
    %186 = vmatpush1.bf16.msra.mxu0 %v164
    %187 = vmatprep.subr.bf16.mxu0 0
    %188 = vmatpush1.bf16.msra.mxu0 %v165
    %189 = vmatprep.subr.bf16.mxu0 0
    %190 = vmatpush1.bf16.msra.mxu0 %v166
    %191 = vmatprep.subr.bf16.mxu0 0
    %192 = vmatpush1.bf16.msra.mxu0 0
    %193 = vmatprep.subr.bf16.mxu0 0
    %194 = vmatpush1.bf16.msra.mxu0 0
    %195 = vmatprep.subr.bf16.mxu0 0
    %196 = vmatpush1.bf16.msra.mxu0 0
    %197 = vmatprep.subr.bf16.mxu0 0
    %198 = vmatpush1.bf16.msra.mxu0 0
    %199 = vmatprep.subr.bf16.mxu0 0
    %200 = vmatpush1.bf16.msra.mxu0 0
    %201 = vmatprep.subr.bf16.mxu0 0
    %202 = vmatpush1.bf16.msra.mxu0 0
    %203 = vmatprep.subr.bf16.mxu0 0
    %204 = vmatpush1.bf16.msra.mxu0 0
    %205 = vmatprep.subr.bf16.mxu0 0
    %206 = vmatpush1.bf16.msra.mxu0 0
    %207 = vmatprep.mubr.bf16.mxu0 0
    %208 = vmatmul.mubr.bf16.gmra.mrb[0].mxu0 %v105
    %v209 = vpop.f32.mrb[0].mxu0
    %v210 = vadd.f32 0.0, %v209
    %v211 = vpop.f32.mrb[0].mxu0
    %v212 = vpop.f32.mrb[0].mxu0
    %v213 = vadd.f32 0.0, %v212
    %v214 = vpop.f32.mrb[0].mxu0
    %215 = vmatprep.mubr.bf16.mxu0 0
    %216 = vmatmul.mubr.bf16.gmra.mrb[0].mxu0 %v106
    %v217 = vpop.f32.mrb[0].mxu0
    %v218 = vadd.f32 0.0, %v217
    %v219 = vpop.f32.mrb[0].mxu0
    %v220 = vpop.f32.mrb[0].mxu0
    %v221 = vadd.f32 0.0, %v220
    %v222 = vpop.f32.mrb[0].mxu0
    %223 = vmatprep.mubr.bf16.mxu0 0
    %224 = vmatmul.mubr.bf16.gmra.mrb[0].mxu0 %v107
    %v225 = vpop.f32.mrb[0].mxu0
    %v226 = vadd.f32 0.0, %v225
    %v227 = vpop.f32.mrb[0].mxu0
    %v228 = vpop.f32.mrb[0].mxu0
    %v229 = vadd.f32 0.0, %v228
    %v230 = vpop.f32.mrb[0].mxu0
    %231 = vmatprep.mubr.bf16.mxu0 0
    %232 = vmatmul.mubr.bf16.gmra.mrb[0].mxu0 %v108
    %v233 = vpop.f32.mrb[0].mxu0
    %v234 = vadd.f32 0.0, %v233
    %v235 = vpop.f32.mrb[0].mxu0
    %v236 = vpop.f32.mrb[0].mxu0
    %v237 = vadd.f32 0.0, %v236
    %v238 = vpop.f32.mrb[0].mxu0
    %239 = vmatprep.mubr.bf16.mxu0 0
    %240 = vmatmul.mubr.bf16.gmra.mrb[0].mxu0 %v109
    %v241 = vpop.f32.mrb[0].mxu0
    %v242 = vadd.f32 0.0, %v241
    %v243 = vpop.f32.mrb[0].mxu0
    %v244 = vpop.f32.mrb[0].mxu0
    %v245 = vadd.f32 0.0, %v244
    %v246 = vpop.f32.mrb[0].mxu0
    %247 = vmatprep.mubr.bf16.mxu0 0
    %248 = vmatmul.mubr.bf16.gmra.mrb[0].mxu0 %v110
    %v249 = vpop.f32.mrb[0].mxu0
    %v250 = vadd.f32 0.0, %v249
    %v251 = vpop.f32.mrb[0].mxu0
    %v252 = vpop.f32.mrb[0].mxu0
    %v253 = vadd.f32 0.0, %v252
    %v254 = vpop.f32.mrb[0].mxu0
    %255 = vmatprep.mubr.bf16.mxu0 0
    %256 = vmatmul.mubr.bf16.gmra.mrb[0].mxu0 %v111
    %v257 = vpop.f32.mrb[0].mxu0
    %v258 = vadd.f32 0.0, %v257
    %v259 = vpop.f32.mrb[0].mxu0
    %v260 = vpop.f32.mrb[0].mxu0
    %v261 = vadd.f32 0.0, %v260
    %v262 = vpop.f32.mrb[0].mxu0
    %263 = vmatprep.mubr.bf16.mxu0 0
    %264 = vmatmul.mubr.bf16.gmra.mrb[0].mxu0 %v112
    %v265 = vpop.f32.mrb[0].mxu0
    %v266 = vadd.f32 0.0, %v265
    %v267 = vpop.f32.mrb[0].mxu0
    %v268 = vpop.f32.mrb[0].mxu0
    %v269 = vadd.f32 0.0, %v268
    %v270 = vpop.f32.mrb[0].mxu0
    %271 = vmatprep.mubr.bf16.mxu0 0
    %272 = vmatmul.mubr.bf16.gmra.mrb[0].mxu0 %v113
    %v273 = vpop.f32.mrb[0].mxu0
    %v274 = vadd.f32 0.0, %v273
    %v275 = vpop.f32.mrb[0].mxu0
    %v276 = vpop.f32.mrb[0].mxu0
    %v277 = vadd.f32 0.0, %v276
    %v278 = vpop.f32.mrb[0].mxu0
    %279 = vmatprep.mubr.bf16.mxu0 0
    %280 = vmatmul.mubr.bf16.gmra.mrb[0].mxu0 %v114
    %v281 = vpop.f32.mrb[0].mxu0
    %v282 = vadd.f32 0.0, %v281
    %v283 = vpop.f32.mrb[0].mxu0
    %v284 = vpop.f32.mrb[0].mxu0
    %v285 = vadd.f32 0.0, %v284
    %v286 = vpop.f32.mrb[0].mxu0
    %287 = vmatprep.mubr.bf16.mxu0 0
    %288 = vmatmul.mubr.bf16.gmra.mrb[0].mxu0 %v115
    %v289 = vpop.f32.mrb[0].mxu0
    %v290 = vadd.f32 0.0, %v289
    %v291 = vpop.f32.mrb[0].mxu0
    %v292 = vpop.f32.mrb[0].mxu0
    %v293 = vpop.f32.mrb[0].mxu0
    %294 = vdwg.mxu0
    %v295 = vmax.f32 %v210, 0.0
    %v296 = vmax.f32 %v213, 0.0
    %v297 = vmax.f32 %v218, 0.0
    %v298 = vmax.f32 %v221, 0.0
    %v299 = vmax.f32 %v226, 0.0
    %v300 = vmax.f32 %v229, 0.0
    %v301 = vmax.f32 %v234, 0.0
    %v302 = vmax.f32 %v237, 0.0
    %v303 = vmax.f32 %v242, 0.0
    %v304 = vmax.f32 %v245, 0.0
    %v305 = vmax.f32 %v250, 0.0
    %v306 = vmax.f32 %v253, 0.0
    %v307 = vmax.f32 %v258, 0.0
    %v308 = vmax.f32 %v261, 0.0
    %v309 = vmax.f32 %v266, 0.0
    %v310 = vmax.f32 %v269, 0.0
    %v311 = vmax.f32 %v274, 0.0
    %v312 = vmax.f32 %v277, 0.0
    %v313 = vmax.f32 %v282, 0.0
    %v314 = vmax.f32 %v285, 0.0
    %v315 = vmax.f32 %v290, 0.0
    %v316 = vpack.c.bf16 %v296, %v295
    %v317 = vpack.c.bf16 %v298, %v297
    %v318 = vpack.c.bf16 %v300, %v299
    %v319 = vpack.c.bf16 %v302, %v301
    %v320 = vpack.c.bf16 %v304, %v303
    %v321 = vpack.c.bf16 %v306, %v305
    %v322 = vpack.c.bf16 %v308, %v307
    %v323 = vpack.c.bf16 %v310, %v309
    %v324 = vpack.c.bf16 %v312, %v311
    %v325 = vpack.c.bf16 %v314, %v313
    %v326 = vpack.c.bf16 %v315, %v315
    %v338 = vunpack.c.l.b16 %v316
    %v339 = vunpack.c.h.b16 %v316
    %v340 = vunpack.c.l.b16 %v317
    %v341 = vunpack.c.h.b16 %v317
    %v342 = vunpack.c.l.b16 %v318
    %v343 = vunpack.c.h.b16 %v318
    %v344 = vunpack.c.l.b16 %v319
    %v345 = vunpack.c.h.b16 %v319
    %v346 = vunpack.c.l.b16 %v320
    %v347 = vunpack.c.h.b16 %v320
    %v348 = vunpack.c.l.b16 %v321
    %v349 = vunpack.c.h.b16 %v321
    %v350 = vunpack.c.l.b16 %v322
    %v351 = vunpack.c.h.b16 %v322
    %v352 = vunpack.c.l.b16 %v323
    %v353 = vunpack.c.h.b16 %v323
    %v354 = vunpack.c.l.b16 %v324
    %v355 = vunpack.c.h.b16 %v324
    %v356 = vunpack.c.l.b16 %v325
    %v357 = vunpack.c.h.b16 %v325
    %v358 = vunpack.c.l.b16 %v326
    %v359 = vpack.c.b16 %v338, %v338
    %v360 = vpack.c.b16 %v339, %v339
    %v361 = vpack.c.b16 %v340, %v340
    %v362 = vpack.c.b16 %v341, %v341
    %v363 = vpack.c.b16 %v342, %v342
    %v364 = vpack.c.b16 %v343, %v343
    %v365 = vpack.c.b16 %v344, %v344
    %v366 = vpack.c.b16 %v345, %v345
    %v367 = vpack.c.b16 %v346, %v346
    %v368 = vpack.c.b16 %v347, %v347
    %v369 = vpack.c.b16 %v348, %v348
    %v370 = vpack.c.b16 %v349, %v349
    %v371 = vpack.c.b16 %v350, %v350
    %v372 = vpack.c.b16 %v351, %v351
    %v373 = vpack.c.b16 %v352, %v352
    %v374 = vpack.c.b16 %v353, %v353
    %v375 = vpack.c.b16 %v354, %v354
    %v376 = vpack.c.b16 %v355, %v355
    %v377 = vpack.c.b16 %v356, %v356
    %v378 = vpack.c.b16 %v357, %v357
    %v379 = vpack.c.b16 %v358, %v358
    %401 = vst [vmem:[%s2] sm:$0xf] %v359
    %402 = vst [vmem:[%s2 + $0x4] sm:$0xf] %v360
    %403 = vst [vmem:[%s2 + $0x8] sm:$0xf] %v361
    %404 = vst [vmem:[%s2 + $0xc] sm:$0xf] %v362
    %405 = vst [vmem:[%s2 + $0x10] sm:$0xf] %v363
    %406 = vst [vmem:[%s2 + $0x14] sm:$0xf] %v364
    %407 = vst [vmem:[%s2 + $0x18] sm:$0xf] %v365
    %408 = vst [vmem:[%s2 + $0x1c] sm:$0xf] %v366
    %409 = vst [vmem:[%s2 + $0x20] sm:$0xf] %v367
    %410 = vst [vmem:[%s2 + $0x24] sm:$0xf] %v368
    %411 = vst [vmem:[%s2 + $0x28] sm:$0xf] %v369
    %412 = vst [vmem:[%s2 + $0x2c] sm:$0xf] %v370
    %413 = vst [vmem:[%s2 + $0x30] sm:$0xf] %v371
    %414 = vst [vmem:[%s2 + $0x34] sm:$0xf] %v372
    %415 = vst [vmem:[%s2 + $0x38] sm:$0xf] %v373
    %416 = vst [vmem:[%s2 + $0x3c] sm:$0xf] %v374
    %417 = vst [vmem:[%s2 + $0x40] sm:$0xf] %v375
    %418 = vst [vmem:[%s2 + $0x44] sm:$0xf] %v376
    %419 = vst [vmem:[%s2 + $0x48] sm:$0xf] %v377
    %420 = vst [vmem:[%s2 + $0x4c] sm:$0xf] %v378
    %421 = vst [vmem:[%s2 + $0x50] sm:$0x1] %v379
    // Predicated region
    $region14: #{forward.7} parent=1 // pred_check
      _
    $region15: #{forward.7} parent=1 // pred_check_branch
      %423 = sbr.rel (0) target = $region17
    $region16: #{forward.7} parent=1 // pred_region
      _
    $region17: #{forward.7} parent=1 // pred_fallthru
      _
    // Predicated region
    $region18: #{forward.7} parent=1 // pred_check
      _
    $region19: #{forward.7} parent=1 // pred_check_branch
      %425 = sbr.rel (0) target = $region21
    $region20: #{forward.7} parent=1 // pred_region
      _
    $region21: #{forward.7} parent=1 // pred_fallthru
      _
    %426 = vsyncpa [#allocation3], 1

// kernel: forward.8
$region0: #{forward.8}
  #allocation0 [shape = 'u32[]', space=smem, size = 0x4, offset = 0x4, fixed_abs, tag = 'smem constant byte address 0x4 - core index']
  #allocation1 [shape = 'u32[144,128]{1,0:T(1,128)}', space=vmem, size = 0x12000, scoped, tag = 'internal scratch']
  %s0 = inlined_call_operand.vmem [shape: bf16[768,64], index: 0, kind: input, shape index: {}]
  %s1 = inlined_call_operand.vmem [shape: bf16[64,128], index: 1, kind: input, shape index: {}]
  %s2 = inlined_call_operand.vmem [shape: bf16[768,128], index: 2, kind: output, shape index: {}]
  %s3 = sld [smem:[#allocation0]]
  $region41: #{forward.8} parent=0
    _
  %s5 = ssub.s32 1, %s3
  %s6 = scalar_select 0, %s5, %s3
  loop: start=0, step=1, limit=5
  $region2: #{forward.8} parent=0 // loop_pre_header
    _
  $region3: #{forward.8} parent=0 // loop_header
    %s8 = sphi 0, %s12
    %p9 = scmp.ge.s32.totalorder %s8, 5
    %s15 = sphi 0, %s27
    %s16 = sphi 0, %s23
    %s17 = sphi 0, %s15
    %s18 = sphi 0, %s16
    %s19 = sphi 0, %s17
    %s20 = sphi 0, %s18
    %s30 = sphi 0, %s32
    %s33 = sphi 0, %s30
    %s34 = sphi 0, %s33
    %s50 = sphi 0, %s34
    %s56 = sphi 0, %s58
    %s59 = sphi 0, %s56
    %s60 = sphi 0, %s59
    %s76 = sphi 0, %s60
    %s84 = sphi 0, %s86
    %s87 = sphi 0, %s84
    %s88 = sphi 0, %s87
    %s104 = sphi 0, %s88
  $region4: #{forward.8} parent=0 // loop_header_branch
    %11 = sbr.rel (%p9) target = $region8
  $region5: #{forward.8} parent=0 // loop_body
    %s13 = ssub.s32 %s8, 1
    %s14 = ssub.s32 %s8, 2
    %s21 = sadd.s32 1, %s16
    %p22 = scmp.ge.s32.totalorder %s21, 3
    %s23 = scalar_select %p22, 0, %s21
    %s24 = sadd.s32 1, %s15
    %s25 = scalar_select %p22, %s24, %s15
    %p26 = scmp.ge.s32.totalorder %s25, 1
    %s27 = scalar_select %p26, 0, %s25
    %s28 = ssub.s32 %s16, %s23
    %p29 = scmp.eq.s32.totalorder %s28, 0
    %s31 = sadd.s32 %s30, 1
    %s32 = scalar_select %p29, %s30, %s31
    %p35 = pneg %p29
    %p36 = scmp.eq.s32.totalorder %s8, 2
    %p37 = por %p35, %p36
    %p38 = scmp.ne.s32.totalorder %s30, %s33
    %p39 = scmp.eq.s32.totalorder %s8, 0
    %p40 = por %p38, %p39
    %p41 = scmp.ne.s32.totalorder %s30, %s33
    %p42 = scmp.eq.s32.totalorder %s13, 2
    %p43 = por %p41, %p42
    %p44 = scmp.ne.s32.totalorder %s33, %s34
    %p45 = scmp.eq.s32.totalorder %s13, 0
    %p46 = por %p44, %p45
    %p47 = scmp.ne.s32.totalorder %s33, %s34
    %p48 = scmp.eq.s32.totalorder %s14, 2
    %p49 = por %p47, %p48
    %p51 = scmp.ne.s32.totalorder %s34, %s50
    %p52 = scmp.eq.s32.totalorder %s14, 0
    %p53 = por %p51, %p52
    %s54 = ssub.s32 %s15, %s27
    %p55 = scmp.eq.s32.totalorder %s54, 0
    %s57 = sadd.s32 %s56, 1
    %s58 = scalar_select %p55, %s56, %s57
    %p61 = pneg %p55
    %p62 = scmp.eq.s32.totalorder %s8, 2
    %p63 = por %p61, %p62
    %p64 = scmp.ne.s32.totalorder %s56, %s59
    %p65 = scmp.eq.s32.totalorder %s8, 0
    %p66 = por %p64, %p65
    %p67 = scmp.ne.s32.totalorder %s56, %s59
    %p68 = scmp.eq.s32.totalorder %s13, 2
    %p69 = por %p67, %p68
    %p70 = scmp.ne.s32.totalorder %s59, %s60
    %p71 = scmp.eq.s32.totalorder %s13, 0
    %p72 = por %p70, %p71
    %p73 = scmp.ne.s32.totalorder %s59, %s60
    %p74 = scmp.eq.s32.totalorder %s14, 2
    %p75 = por %p73, %p74
    %p77 = scmp.ne.s32.totalorder %s60, %s76
    %p78 = scmp.eq.s32.totalorder %s14, 0
    %p79 = por %p77, %p78
    %s80 = ssub.s32 %s16, %s23
    %s81 = ssub.s32 %s15, %s27
    %s82 = sor.u32 %s80, %s81
    %p83 = scmp.eq.s32.totalorder %s82, 0
    %s85 = sadd.s32 %s84, 1
    %s86 = scalar_select %p83, %s84, %s85
    %p89 = pneg %p83
    %p90 = scmp.eq.s32.totalorder %s8, 2
    %p91 = por %p89, %p90
    %p92 = scmp.ne.s32.totalorder %s84, %s87
    %p93 = scmp.eq.s32.totalorder %s8, 0
    %p94 = por %p92, %p93
    %p95 = scmp.ne.s32.totalorder %s84, %s87
    %p96 = scmp.eq.s32.totalorder %s13, 2
    %p97 = por %p95, %p96
    %p98 = scmp.ne.s32.totalorder %s87, %s88
    %p99 = scmp.eq.s32.totalorder %s13, 0
    %p100 = por %p98, %p99
    %p101 = scmp.ne.s32.totalorder %s87, %s88
    %p102 = scmp.eq.s32.totalorder %s14, 2
    %p103 = por %p101, %p102
    %p105 = scmp.ne.s32.totalorder %s88, %s104
    %p106 = scmp.eq.s32.totalorder %s14, 0
    %p107 = por %p105, %p106
    %p108 = scmp.le.s32.totalorder 1, %s8
    %p109 = scmp.lt.s32.totalorder %s8, 4
    %p110 = pnand %p108, %p109
    %p111 = pneg %p110
    // Predicated region
    $region9: #{forward.8} parent=5 // pred_check
      _
    $region10: #{forward.8} parent=5 // pred_check_branch
      %113 = sbr.rel (%p110) target = $region12
    $region11: #{forward.8} parent=5 // pred_region
      %s114 = ssub.s32 %s8, 1
      // Predicated region
      $region13: #{forward.8} parent=11 // pred_check
        %p115 = pneg %p72
      $region14: #{forward.8} parent=11 // pred_check_branch
        %117 = sbr.rel (%p115) target = $region16
      $region15: #{forward.8} parent=11 // pred_region
        %p118 = scmp.lt.s32.totalorder %s17, 0
        %s119 = scalar_select %p118, %s17, 0
        %s120 = smul.addr %s119, 4
        %s121 = scalar_lea.vmem %s1, %s120
      $region16: #{forward.8} parent=11 // pred_fallthru
        _
    $region12: #{forward.8} parent=5 // pred_fallthru
      _
    %p122 = scmp.lt.s32.totalorder %s8, 3
    // Predicated region
    $region17: #{forward.8} parent=5 // pred_check
      %p123 = pneg %p122
    $region18: #{forward.8} parent=5 // pred_check_branch
      %125 = sbr.rel (%p123) target = $region20
    $region19: #{forward.8} parent=5 // pred_region
      // Predicated region
      $region21: #{forward.8} parent=19 // pred_check
        %p126 = pneg %p40
      $region22: #{forward.8} parent=19 // pred_check_branch
        %128 = sbr.rel (%p126) target = $region24
      $region23: #{forward.8} parent=19 // pred_region
        %s129 = smul.u32 32, %s16
        %p130 = scmp.lt.s32.totalorder %s129, 95
        %s131 = scalar_select %p130, %s129, 95
        %s132 = smul.addr %s131, 4
        %s133 = scalar_lea.vmem %s0, %s132
        %s134 = smul.u32 32, %s16
      $region24: #{forward.8} parent=19 // pred_fallthru
        _
    $region20: #{forward.8} parent=5 // pred_fallthru
      _
    %p135 = scmp.le.s32.totalorder 1, %s8
    %p136 = scmp.lt.s32.totalorder %s8, 4
    %p137 = pnand %p135, %p136
    %p138 = pneg %p137
    // Predicated region
    $region25: #{forward.8} parent=5 // pred_check
      _
    $region26: #{forward.8} parent=5 // pred_check_branch
      %140 = sbr.rel (%p137) target = $region28
    $region27: #{forward.8} parent=5 // pred_region
      %s141 = ssub.s32 %s8, 1
      %s142 = smul.u32 32, %s18
      %p143 = scmp.lt.s32.totalorder %s142, 95
      %s144 = scalar_select %p143, %s142, 95
      %s145 = smul.addr %s144, 4
      %s146 = scalar_lea.vmem %s0, %s145
      %p147 = pneg %p46
      %p148 = pneg %p43
      %p149 = scmp.lt.s32.totalorder %s17, 0
      %s150 = scalar_select %p149, %s17, 0
      %s151 = smul.addr %s150, 4
      %s152 = scalar_lea.vmem %s1, %s151
      %p153 = pneg %p72
      %p154 = pneg %p69
      %p155 = pneg %p100
      %p156 = pneg %p97
      %s157 = smul.u32 32, %s18
      %p158 = scmp.lt.s32.totalorder %s157, 95
      %s159 = scalar_select %p158, %s157, 95
      %p160 = scmp.lt.s32.totalorder %s17, 0
      %s161 = scalar_select %p160, %s17, 0
      %s162 = sadd.s32 %s161, %s159
      %s163 = smul.addr %s162, 4
      %s164 = scalar_lea.vmem %s2, %s163
      %s165 = smul.u32 32, %s18
      %p166 = scmp.lt.s32.totalorder %s165, 95
      %s167 = scalar_select %p166, %s165, 95
      %s168 = smul.addr %s167, 4
      %s169 = scalar_lea.vmem %s0, %s168
      %s170 = smul.u32 32, %s18
      %p171 = scmp.lt.s32.totalorder %s17, 0
      %s172 = scalar_select %p171, %s17, 0
      %s173 = smul.addr %s172, 4
      %s174 = scalar_lea.vmem %s1, %s173
      %s175 = smul.u32 32, %s18
      %p176 = scmp.lt.s32.totalorder %s175, 95
      %s177 = scalar_select %p176, %s175, 95
      %p178 = scmp.lt.s32.totalorder %s17, 0
      %s179 = scalar_select %p178, %s17, 0
      %s180 = sadd.s32 %s179, %s177
      %s181 = smul.addr %s180, 4
      %s182 = scalar_lea.vmem %s2, %s181
      %s183 = smul.u32 32, %s18
      %v185 = vld [vmem:[%s169] sm:$0xf]
      %v186 = vld [vmem:[%s169 + $0x4] sm:$0xf]
      %v187 = vld [vmem:[%s169 + $0x8] sm:$0xf]
      %v188 = vld [vmem:[%s169 + $0xc] sm:$0xf]
      %v189 = vld [vmem:[%s169 + $0x10] sm:$0xf]
      %v190 = vld [vmem:[%s169 + $0x14] sm:$0xf]
      %v191 = vld [vmem:[%s169 + $0x18] sm:$0xf]
      %v192 = vld [vmem:[%s169 + $0x1c] sm:$0xf]
      %v193 = vld [vmem:[%s169 + $0x20] sm:$0xf]
      %v194 = vld [vmem:[%s169 + $0x24] sm:$0xf]
      %v195 = vld [vmem:[%s169 + $0x28] sm:$0xf]
      %v196 = vld [vmem:[%s169 + $0x2c] sm:$0xf]
      %v197 = vld [vmem:[%s169 + $0x30] sm:$0xf]
      %v198 = vld [vmem:[%s169 + $0x34] sm:$0xf]
      %v199 = vld [vmem:[%s169 + $0x38] sm:$0xf]
      %v200 = vld [vmem:[%s169 + $0x3c] sm:$0xf]
      %v201 = vld [vmem:[%s169 + $0x40] sm:$0xf]
      %v202 = vld [vmem:[%s169 + $0x44] sm:$0xf]
      %v203 = vld [vmem:[%s169 + $0x48] sm:$0xf]
      %v204 = vld [vmem:[%s169 + $0x4c] sm:$0xf]
      %v205 = vld [vmem:[%s169 + $0x50] sm:$0xf]
      %v206 = vld [vmem:[%s169 + $0x54] sm:$0xf]
      %v207 = vld [vmem:[%s169 + $0x58] sm:$0xf]
      %v208 = vld [vmem:[%s169 + $0x5c] sm:$0xf]
      %v209 = vld [vmem:[%s169 + $0x60] sm:$0xf]
      %v210 = vld [vmem:[%s169 + $0x64] sm:$0xf]
      %v211 = vld [vmem:[%s169 + $0x68] sm:$0xf]
      %v212 = vld [vmem:[%s169 + $0x6c] sm:$0xf]
      %v213 = vld [vmem:[%s169 + $0x70] sm:$0xf]
      %v214 = vld [vmem:[%s169 + $0x74] sm:$0xf]
      %v215 = vld [vmem:[%s169 + $0x78] sm:$0xf]
      %v216 = vld [vmem:[%s169 + $0x7c] sm:$0xf]
      %v217 = vld [vmem:[%s174] sm:$0xf]
      %v218 = vld [vmem:[%s174 + $0x4] sm:$0xf]
      %v219 = vld [vmem:[%s174 + $0x8] sm:$0xf]
      %v220 = vld [vmem:[%s174 + $0xc] sm:$0xf]
      %v221 = vld [vmem:[%s174 + $0x10] sm:$0xf]
      %v222 = vld [vmem:[%s174 + $0x14] sm:$0xf]
      %v223 = vld [vmem:[%s174 + $0x18] sm:$0xf]
      %v224 = vld [vmem:[%s174 + $0x1c] sm:$0xf]
      %v257 = vunpack.c.l.b16 %v185
      %v258 = vunpack.c.l.b16 %v186
      %v259 = vunpack.c.l.b16 %v187
      %v260 = vunpack.c.l.b16 %v188
      %v261 = vunpack.c.l.b16 %v189
      %v262 = vunpack.c.l.b16 %v190
      %v263 = vunpack.c.l.b16 %v191
      %v264 = vunpack.c.l.b16 %v192
      %v265 = vunpack.c.l.b16 %v193
      %v266 = vunpack.c.l.b16 %v194
      %v267 = vunpack.c.l.b16 %v195
      %v268 = vunpack.c.l.b16 %v196
      %v269 = vunpack.c.l.b16 %v197
      %v270 = vunpack.c.l.b16 %v198
      %v271 = vunpack.c.l.b16 %v199
      %v272 = vunpack.c.l.b16 %v200
      %v273 = vunpack.c.l.b16 %v201
      %v274 = vunpack.c.l.b16 %v202
      %v275 = vunpack.c.l.b16 %v203
      %v276 = vunpack.c.l.b16 %v204
      %v277 = vunpack.c.l.b16 %v205
      %v278 = vunpack.c.l.b16 %v206
      %v279 = vunpack.c.l.b16 %v207
      %v280 = vunpack.c.l.b16 %v208
      %v281 = vunpack.c.l.b16 %v209
      %v282 = vunpack.c.l.b16 %v210
      %v283 = vunpack.c.l.b16 %v211
      %v284 = vunpack.c.l.b16 %v212
      %v285 = vunpack.c.l.b16 %v213
      %v286 = vunpack.c.l.b16 %v214
      %v287 = vunpack.c.l.b16 %v215
      %v288 = vunpack.c.l.b16 %v216
      %v289 = vpack.c.b16 %v258, %v257
      %v290 = vpack.c.b16 %v260, %v259
      %v291 = vpack.c.b16 %v262, %v261
      %v292 = vpack.c.b16 %v264, %v263
      %v293 = vpack.c.b16 %v266, %v265
      %v294 = vpack.c.b16 %v268, %v267
      %v295 = vpack.c.b16 %v270, %v269
      %v296 = vpack.c.b16 %v272, %v271
      %v297 = vpack.c.b16 %v274, %v273
      %v298 = vpack.c.b16 %v276, %v275
      %v299 = vpack.c.b16 %v278, %v277
      %v300 = vpack.c.b16 %v280, %v279
      %v301 = vpack.c.b16 %v282, %v281
      %v302 = vpack.c.b16 %v284, %v283
      %v303 = vpack.c.b16 %v286, %v285
      %v304 = vpack.c.b16 %v288, %v287
      %v313 = vunpack.c.l.b16 %v217
      %v314 = vunpack.c.l.b16 %v218
      %v315 = vunpack.c.l.b16 %v219
      %v316 = vunpack.c.l.b16 %v220
      %v317 = vunpack.c.l.b16 %v221
      %v318 = vunpack.c.l.b16 %v222
      %v319 = vunpack.c.l.b16 %v223
      %v320 = vunpack.c.l.b16 %v224
      %v321 = vpack.c.b16 %v314, %v313
      %v322 = vpack.c.b16 %v316, %v315
      %v323 = vpack.c.b16 %v318, %v317
      %v324 = vpack.c.b16 %v320, %v319
      %vm329 = vcmask 523264
      %v331 = vsel %vm329, %v289, 0
      %v334 = vsel %vm329, %v290, 0
      %v337 = vsel %vm329, %v291, 0
      %v340 = vsel %vm329, %v292, 0
      %v343 = vsel %vm329, %v293, 0
      %v346 = vsel %vm329, %v294, 0
      %v349 = vsel %vm329, %v295, 0
      %v352 = vsel %vm329, %v296, 0
      %v355 = vsel %vm329, %v297, 0
      %v358 = vsel %vm329, %v298, 0
      %v361 = vsel %vm329, %v299, 0
      %v364 = vsel %vm329, %v300, 0
      %v367 = vsel %vm329, %v301, 0
      %v370 = vsel %vm329, %v302, 0
      %v373 = vsel %vm329, %v303, 0
      %v376 = vsel %vm329, %v304, 0
      %378 = vmatprep.subr.bf16.mxu0 0
      %379 = vmatpush1.bf16.msra.mxu0 %v321
      %380 = vmatprep.subr.bf16.mxu0 0
      %381 = vmatpush1.bf16.msra.mxu0 %v322
      %382 = vmatprep.subr.bf16.mxu0 0
      %383 = vmatpush1.bf16.msra.mxu0 %v323
      %384 = vmatprep.subr.bf16.mxu0 0
      %385 = vmatpush1.bf16.msra.mxu0 %v324
      %386 = vmatprep.subr.bf16.mxu0 0
      %387 = vmatpush1.bf16.msra.mxu0 0
      %388 = vmatprep.subr.bf16.mxu0 0
      %389 = vmatpush1.bf16.msra.mxu0 0
      %390 = vmatprep.subr.bf16.mxu0 0
      %391 = vmatpush1.bf16.msra.mxu0 0
      %392 = vmatprep.subr.bf16.mxu0 0
      %393 = vmatpush1.bf16.msra.mxu0 0
      %394 = vmatprep.subr.bf16.mxu0 0
      %395 = vmatpush1.bf16.msra.mxu0 0
      %396 = vmatprep.subr.bf16.mxu0 0
      %397 = vmatpush1.bf16.msra.mxu0 0
      %398 = vmatprep.subr.bf16.mxu0 0
      %399 = vmatpush1.bf16.msra.mxu0 0
      %400 = vmatprep.subr.bf16.mxu0 0
      %401 = vmatpush1.bf16.msra.mxu0 0
      %402 = vmatprep.subr.bf16.mxu0 0
      %403 = vmatpush1.bf16.msra.mxu0 0
      %404 = vmatprep.subr.bf16.mxu0 0
      %405 = vmatpush1.bf16.msra.mxu0 0
      %406 = vmatprep.subr.bf16.mxu0 0
      %407 = vmatpush1.bf16.msra.mxu0 0
      %408 = vmatprep.subr.bf16.mxu0 0
      %409 = vmatpush1.bf16.msra.mxu0 0
      %410 = vmatprep.mubr.bf16.mxu0 0
      %411 = vmatmul.mubr.bf16.gmra.mrb[0].mxu0 %v331
      %v412 = vpop.f32.mrb[0].mxu0
      %v413 = vadd.f32 0.0, %v412
      %v414 = vpop.f32.mrb[0].mxu0
      %v415 = vpop.f32.mrb[0].mxu0
      %v416 = vadd.f32 0.0, %v415
      %v417 = vpop.f32.mrb[0].mxu0
      %418 = vmatprep.mubr.bf16.mxu0 0
      %419 = vmatmul.mubr.bf16.gmra.mrb[0].mxu0 %v334
      %v420 = vpop.f32.mrb[0].mxu0
      %v421 = vadd.f32 0.0, %v420
      %v422 = vpop.f32.mrb[0].mxu0
      %v423 = vpop.f32.mrb[0].mxu0
      %v424 = vadd.f32 0.0, %v423
      %v425 = vpop.f32.mrb[0].mxu0
      %426 = vmatprep.mubr.bf16.mxu0 0
      %427 = vmatmul.mubr.bf16.gmra.mrb[0].mxu0 %v337
      %v428 = vpop.f32.mrb[0].mxu0
      %v429 = vadd.f32 0.0, %v428
      %v430 = vpop.f32.mrb[0].mxu0
      %v431 = vpop.f32.mrb[0].mxu0
      %v432 = vadd.f32 0.0, %v431
      %v433 = vpop.f32.mrb[0].mxu0
      %434 = vmatprep.mubr.bf16.mxu0 0
      %435 = vmatmul.mubr.bf16.gmra.mrb[0].mxu0 %v340
      %v436 = vpop.f32.mrb[0].mxu0
      %v437 = vadd.f32 0.0, %v436
      %v438 = vpop.f32.mrb[0].mxu0
      %v439 = vpop.f32.mrb[0].mxu0
      %v440 = vadd.f32 0.0, %v439
      %v441 = vpop.f32.mrb[0].mxu0
      %442 = vmatprep.mubr.bf16.mxu0 0
      %443 = vmatmul.mubr.bf16.gmra.mrb[0].mxu0 %v343
      %v444 = vpop.f32.mrb[0].mxu0
      %v445 = vadd.f32 0.0, %v444
      %v446 = vpop.f32.mrb[0].mxu0
      %v447 = vpop.f32.mrb[0].mxu0
      %v448 = vadd.f32 0.0, %v447
      %v449 = vpop.f32.mrb[0].mxu0
      %450 = vmatprep.mubr.bf16.mxu0 0
      %451 = vmatmul.mubr.bf16.gmra.mrb[0].mxu0 %v346
      %v452 = vpop.f32.mrb[0].mxu0
      %v453 = vadd.f32 0.0, %v452
      %v454 = vpop.f32.mrb[0].mxu0
      %v455 = vpop.f32.mrb[0].mxu0
      %v456 = vadd.f32 0.0, %v455
      %v457 = vpop.f32.mrb[0].mxu0
      %458 = vmatprep.mubr.bf16.mxu0 0
      %459 = vmatmul.mubr.bf16.gmra.mrb[0].mxu0 %v349
      %v460 = vpop.f32.mrb[0].mxu0
      %v461 = vadd.f32 0.0, %v460
      %v462 = vpop.f32.mrb[0].mxu0
      %v463 = vpop.f32.mrb[0].mxu0
      %v464 = vadd.f32 0.0, %v463
      %v465 = vpop.f32.mrb[0].mxu0
      %466 = vmatprep.mubr.bf16.mxu0 0
      %467 = vmatmul.mubr.bf16.gmra.mrb[0].mxu0 %v352
      %v468 = vpop.f32.mrb[0].mxu0
      %v469 = vadd.f32 0.0, %v468
      %v470 = vpop.f32.mrb[0].mxu0
      %v471 = vpop.f32.mrb[0].mxu0
      %v472 = vadd.f32 0.0, %v471
      %v473 = vpop.f32.mrb[0].mxu0
      %474 = vmatprep.mubr.bf16.mxu0 0
      %475 = vmatmul.mubr.bf16.gmra.mrb[0].mxu0 %v355
      %v476 = vpop.f32.mrb[0].mxu0
      %v477 = vadd.f32 0.0, %v476
      %v478 = vpop.f32.mrb[0].mxu0
      %v479 = vpop.f32.mrb[0].mxu0
      %v480 = vadd.f32 0.0, %v479
      %v481 = vpop.f32.mrb[0].mxu0
      %482 = vmatprep.mubr.bf16.mxu0 0
      %483 = vmatmul.mubr.bf16.gmra.mrb[0].mxu0 %v358
      %v484 = vpop.f32.mrb[0].mxu0
      %v485 = vadd.f32 0.0, %v484
      %v486 = vpop.f32.mrb[0].mxu0
      %v487 = vpop.f32.mrb[0].mxu0
      %v488 = vadd.f32 0.0, %v487
      %v489 = vpop.f32.mrb[0].mxu0
      %490 = vmatprep.mubr.bf16.mxu0 0
      %491 = vmatmul.mubr.bf16.gmra.mrb[0].mxu0 %v361
      %v492 = vpop.f32.mrb[0].mxu0
      %v493 = vadd.f32 0.0, %v492
      %v494 = vpop.f32.mrb[0].mxu0
      %v495 = vpop.f32.mrb[0].mxu0
      %v496 = vadd.f32 0.0, %v495
      %v497 = vpop.f32.mrb[0].mxu0
      %498 = vmatprep.mubr.bf16.mxu0 0
      %499 = vmatmul.mubr.bf16.gmra.mrb[0].mxu0 %v364
      %v500 = vpop.f32.mrb[0].mxu0
      %v501 = vadd.f32 0.0, %v500
      %v502 = vpop.f32.mrb[0].mxu0
      %v503 = vpop.f32.mrb[0].mxu0
      %v504 = vadd.f32 0.0, %v503
      %v505 = vpop.f32.mrb[0].mxu0
      %506 = vmatprep.mubr.bf16.mxu0 0
      %507 = vmatmul.mubr.bf16.gmra.mrb[0].mxu0 %v367
      %v508 = vpop.f32.mrb[0].mxu0
      %v509 = vadd.f32 0.0, %v508
      %v510 = vpop.f32.mrb[0].mxu0
      %v511 = vpop.f32.mrb[0].mxu0
      %v512 = vadd.f32 0.0, %v511
      %v513 = vpop.f32.mrb[0].mxu0
      %514 = vmatprep.mubr.bf16.mxu0 0
      %515 = vmatmul.mubr.bf16.gmra.mrb[0].mxu0 %v370
      %v516 = vpop.f32.mrb[0].mxu0
      %v517 = vadd.f32 0.0, %v516
      %v518 = vpop.f32.mrb[0].mxu0
      %v519 = vpop.f32.mrb[0].mxu0
      %v520 = vadd.f32 0.0, %v519
      %v521 = vpop.f32.mrb[0].mxu0
      %522 = vmatprep.mubr.bf16.mxu0 0
      %523 = vmatmul.mubr.bf16.gmra.mrb[0].mxu0 %v373
      %v524 = vpop.f32.mrb[0].mxu0
      %v525 = vadd.f32 0.0, %v524
      %v526 = vpop.f32.mrb[0].mxu0
      %v527 = vpop.f32.mrb[0].mxu0
      %v528 = vadd.f32 0.0, %v527
      %v529 = vpop.f32.mrb[0].mxu0
      %530 = vmatprep.mubr.bf16.mxu0 0
      %531 = vmatmul.mubr.bf16.gmra.mrb[0].mxu0 %v376
      %v532 = vpop.f32.mrb[0].mxu0
      %v533 = vadd.f32 0.0, %v532
      %v534 = vpop.f32.mrb[0].mxu0
      %v535 = vpop.f32.mrb[0].mxu0
      %v536 = vadd.f32 0.0, %v535
      %v537 = vpop.f32.mrb[0].mxu0
      %538 = vdwg.mxu0
      %v539 = vmax.f32 %v413, 0.0
      %v540 = vmax.f32 %v416, 0.0
      %v541 = vmax.f32 %v421, 0.0
      %v542 = vmax.f32 %v424, 0.0
      %v543 = vmax.f32 %v429, 0.0
      %v544 = vmax.f32 %v432, 0.0
      %v545 = vmax.f32 %v437, 0.0
      %v546 = vmax.f32 %v440, 0.0
      %v547 = vmax.f32 %v445, 0.0
      %v548 = vmax.f32 %v448, 0.0
      %v549 = vmax.f32 %v453, 0.0
      %v550 = vmax.f32 %v456, 0.0
      %v551 = vmax.f32 %v461, 0.0
      %v552 = vmax.f32 %v464, 0.0
      %v553 = vmax.f32 %v469, 0.0
      %v554 = vmax.f32 %v472, 0.0
      %v555 = vmax.f32 %v477, 0.0
      %v556 = vmax.f32 %v480, 0.0
      %v557 = vmax.f32 %v485, 0.0
      %v558 = vmax.f32 %v488, 0.0
      %v559 = vmax.f32 %v493, 0.0
      %v560 = vmax.f32 %v496, 0.0
      %v561 = vmax.f32 %v501, 0.0
      %v562 = vmax.f32 %v504, 0.0
      %v563 = vmax.f32 %v509, 0.0
      %v564 = vmax.f32 %v512, 0.0
      %v565 = vmax.f32 %v517, 0.0
      %v566 = vmax.f32 %v520, 0.0
      %v567 = vmax.f32 %v525, 0.0
      %v568 = vmax.f32 %v528, 0.0
      %v569 = vmax.f32 %v533, 0.0
      %v570 = vmax.f32 %v536, 0.0
      %v571 = vpack.c.bf16 %v540, %v539
      %v572 = vpack.c.bf16 %v542, %v541
      %v573 = vpack.c.bf16 %v544, %v543
      %v574 = vpack.c.bf16 %v546, %v545
      %v575 = vpack.c.bf16 %v548, %v547
      %v576 = vpack.c.bf16 %v550, %v549
      %v577 = vpack.c.bf16 %v552, %v551
      %v578 = vpack.c.bf16 %v554, %v553
      %v579 = vpack.c.bf16 %v556, %v555
      %v580 = vpack.c.bf16 %v558, %v557
      %v581 = vpack.c.bf16 %v560, %v559
      %v582 = vpack.c.bf16 %v562, %v561
      %v583 = vpack.c.bf16 %v564, %v563
      %v584 = vpack.c.bf16 %v566, %v565
      %v585 = vpack.c.bf16 %v568, %v567
      %v586 = vpack.c.bf16 %v570, %v569
      %v603 = vunpack.c.l.b16 %v571
      %v604 = vunpack.c.h.b16 %v571
      %v605 = vunpack.c.l.b16 %v572
      %v606 = vunpack.c.h.b16 %v572
      %v607 = vunpack.c.l.b16 %v573
      %v608 = vunpack.c.h.b16 %v573
      %v609 = vunpack.c.l.b16 %v574
      %v610 = vunpack.c.h.b16 %v574
      %v611 = vunpack.c.l.b16 %v575
      %v612 = vunpack.c.h.b16 %v575
      %v613 = vunpack.c.l.b16 %v576
      %v614 = vunpack.c.h.b16 %v576
      %v615 = vunpack.c.l.b16 %v577
      %v616 = vunpack.c.h.b16 %v577
      %v617 = vunpack.c.l.b16 %v578
      %v618 = vunpack.c.h.b16 %v578
      %v619 = vunpack.c.l.b16 %v579
      %v620 = vunpack.c.h.b16 %v579
      %v621 = vunpack.c.l.b16 %v580
      %v622 = vunpack.c.h.b16 %v580
      %v623 = vunpack.c.l.b16 %v581
      %v624 = vunpack.c.h.b16 %v581
      %v625 = vunpack.c.l.b16 %v582
      %v626 = vunpack.c.h.b16 %v582
      %v627 = vunpack.c.l.b16 %v583
      %v628 = vunpack.c.h.b16 %v583
      %v629 = vunpack.c.l.b16 %v584
      %v630 = vunpack.c.h.b16 %v584
      %v631 = vunpack.c.l.b16 %v585
      %v632 = vunpack.c.h.b16 %v585
      %v633 = vunpack.c.l.b16 %v586
      %v634 = vunpack.c.h.b16 %v586
      %v635 = vpack.c.b16 %v603, %v603
      %v636 = vpack.c.b16 %v604, %v604
      %v637 = vpack.c.b16 %v605, %v605
      %v638 = vpack.c.b16 %v606, %v606
      %v639 = vpack.c.b16 %v607, %v607
      %v640 = vpack.c.b16 %v608, %v608
      %v641 = vpack.c.b16 %v609, %v609
      %v642 = vpack.c.b16 %v610, %v610
      %v643 = vpack.c.b16 %v611, %v611
      %v644 = vpack.c.b16 %v612, %v612
      %v645 = vpack.c.b16 %v613, %v613
      %v646 = vpack.c.b16 %v614, %v614
      %v647 = vpack.c.b16 %v615, %v615
      %v648 = vpack.c.b16 %v616, %v616
      %v649 = vpack.c.b16 %v617, %v617
      %v650 = vpack.c.b16 %v618, %v618
      %v651 = vpack.c.b16 %v619, %v619
      %v652 = vpack.c.b16 %v620, %v620
      %v653 = vpack.c.b16 %v621, %v621
      %v654 = vpack.c.b16 %v622, %v622
      %v655 = vpack.c.b16 %v623, %v623
      %v656 = vpack.c.b16 %v624, %v624
      %v657 = vpack.c.b16 %v625, %v625
      %v658 = vpack.c.b16 %v626, %v626
      %v659 = vpack.c.b16 %v627, %v627
      %v660 = vpack.c.b16 %v628, %v628
      %v661 = vpack.c.b16 %v629, %v629
      %v662 = vpack.c.b16 %v630, %v630
      %v663 = vpack.c.b16 %v631, %v631
      %v664 = vpack.c.b16 %v632, %v632
      %v665 = vpack.c.b16 %v633, %v633
      %v666 = vpack.c.b16 %v634, %v634
      %699 = vst [vmem:[%s182] sm:$0xf] %v635
      %700 = vst [vmem:[%s182 + $0x4] sm:$0xf] %v636
      %701 = vst [vmem:[%s182 + $0x8] sm:$0xf] %v637
      %702 = vst [vmem:[%s182 + $0xc] sm:$0xf] %v638
      %703 = vst [vmem:[%s182 + $0x10] sm:$0xf] %v639
      %704 = vst [vmem:[%s182 + $0x14] sm:$0xf] %v640
      %705 = vst [vmem:[%s182 + $0x18] sm:$0xf] %v641
      %706 = vst [vmem:[%s182 + $0x1c] sm:$0xf] %v642
      %707 = vst [vmem:[%s182 + $0x20] sm:$0xf] %v643
      %708 = vst [vmem:[%s182 + $0x24] sm:$0xf] %v644
      %709 = vst [vmem:[%s182 + $0x28] sm:$0xf] %v645
      %710 = vst [vmem:[%s182 + $0x2c] sm:$0xf] %v646
      %711 = vst [vmem:[%s182 + $0x30] sm:$0xf] %v647
      %712 = vst [vmem:[%s182 + $0x34] sm:$0xf] %v648
      %713 = vst [vmem:[%s182 + $0x38] sm:$0xf] %v649
      %714 = vst [vmem:[%s182 + $0x3c] sm:$0xf] %v650
      %715 = vst [vmem:[%s182 + $0x40] sm:$0xf] %v651
      %716 = vst [vmem:[%s182 + $0x44] sm:$0xf] %v652
      %717 = vst [vmem:[%s182 + $0x48] sm:$0xf] %v653
      %718 = vst [vmem:[%s182 + $0x4c] sm:$0xf] %v654
      %719 = vst [vmem:[%s182 + $0x50] sm:$0xf] %v655
      %720 = vst [vmem:[%s182 + $0x54] sm:$0xf] %v656
      %721 = vst [vmem:[%s182 + $0x58] sm:$0xf] %v657
      %722 = vst [vmem:[%s182 + $0x5c] sm:$0xf] %v658
      %723 = vst [vmem:[%s182 + $0x60] sm:$0xf] %v659
      %724 = vst [vmem:[%s182 + $0x64] sm:$0xf] %v660
      %725 = vst [vmem:[%s182 + $0x68] sm:$0xf] %v661
      %726 = vst [vmem:[%s182 + $0x6c] sm:$0xf] %v662
      %727 = vst [vmem:[%s182 + $0x70] sm:$0xf] %v663
      %728 = vst [vmem:[%s182 + $0x74] sm:$0xf] %v664
      %729 = vst [vmem:[%s182 + $0x78] sm:$0xf] %v665
      %730 = vst [vmem:[%s182 + $0x7c] sm:$0xf] %v666
      %s731 = smul.u32 32, %s18
      %p732 = scmp.lt.s32.totalorder %s731, 95
      %s733 = scalar_select %p732, %s731, 95
      %p734 = scmp.lt.s32.totalorder %s17, 0
      %s735 = scalar_select %p734, %s17, 0
      %s736 = sadd.s32 %s735, %s733
      %s737 = smul.addr %s736, 4
      %s738 = scalar_lea.vmem %s2, %s737
      // Predicated region
      $region29: #{forward.8} parent=27 // pred_check
        %p739 = pneg %p97
      $region30: #{forward.8} parent=27 // pred_check_branch
        %741 = sbr.rel (%p739) target = $region32
      $region31: #{forward.8} parent=27 // pred_region
        %s742 = smul.u32 32, %s18
      $region32: #{forward.8} parent=27 // pred_fallthru
        _
    $region28: #{forward.8} parent=5 // pred_fallthru
      _
    %p743 = scmp.le.s32.totalorder 2, %s8
    // Predicated region
    $region33: #{forward.8} parent=5 // pred_check
      %p744 = pneg %p743
    $region34: #{forward.8} parent=5 // pred_check_branch
      %746 = sbr.rel (%p744) target = $region36
    $region35: #{forward.8} parent=5 // pred_region
      %s747 = ssub.s32 %s8, 2
      // Predicated region
      $region37: #{forward.8} parent=35 // pred_check
        %p748 = pneg %p103
      $region38: #{forward.8} parent=35 // pred_check_branch
        %750 = sbr.rel (%p748) target = $region40
      $region39: #{forward.8} parent=35 // pred_region
        %s751 = smul.u32 32, %s20
        %p752 = scmp.lt.s32.totalorder %s751, 95
        %s753 = scalar_select %p752, %s751, 95
        %p754 = scmp.lt.s32.totalorder %s19, 0
        %s755 = scalar_select %p754, %s19, 0
        %s756 = sadd.s32 %s755, %s753
        %s757 = smul.addr %s756, 4
        %s758 = scalar_lea.vmem %s2, %s757
      $region40: #{forward.8} parent=35 // pred_fallthru
        _
    $region36: #{forward.8} parent=5 // pred_fallthru
      _
  $region6: #{forward.8} parent=0 // loop_footer
    %s12 = sadd.s32 1, %s8
  $region7: #{forward.8} parent=0 // loop_footer_branch
    %7 = sbr.rel target = $region3
  $region8: #{forward.8} parent=0 // loop_exit
    _

// kernel: forward.9
$region0: #{forward.9}
  #allocation0 [shape = 'u32[]', space=smem, size = 0x4, offset = 0x4, fixed_abs, tag = 'smem constant byte address 0x4 - core index']
  #allocation1 [shape = 'u32[144,128]{1,0:T(1,128)}', space=vmem, size = 0x12000, scoped, tag = 'internal scratch']
  %s0 = inlined_call_operand.vmem [shape: bf16[2304,32], index: 0, kind: input, shape index: {}]
  %s1 = inlined_call_operand.vmem [shape: bf16[32,128], index: 1, kind: input, shape index: {}]
  %s2 = inlined_call_operand.vmem [shape: bf16[2304,128], index: 2, kind: output, shape index: {}]
  %s3 = sld [smem:[#allocation0]]
  $region41: #{forward.9} parent=0
    _
  %s5 = ssub.s32 1, %s3
  %s6 = scalar_select 0, %s5, %s3
  loop: start=0, step=1, limit=11
  $region2: #{forward.9} parent=0 // loop_pre_header
    _
  $region3: #{forward.9} parent=0 // loop_header
    %s8 = sphi 0, %s12
    %p9 = scmp.ge.s32.totalorder %s8, 11
    %s15 = sphi 0, %s27
    %s16 = sphi 0, %s23
    %s17 = sphi 0, %s15
    %s18 = sphi 0, %s16
    %s19 = sphi 0, %s17
    %s20 = sphi 0, %s18
    %s30 = sphi 0, %s32
    %s33 = sphi 0, %s30
    %s34 = sphi 0, %s33
    %s50 = sphi 0, %s34
    %s56 = sphi 0, %s58
    %s59 = sphi 0, %s56
    %s60 = sphi 0, %s59
    %s76 = sphi 0, %s60
    %s84 = sphi 0, %s86
    %s87 = sphi 0, %s84
    %s88 = sphi 0, %s87
    %s104 = sphi 0, %s88
  $region4: #{forward.9} parent=0 // loop_header_branch
    %11 = sbr.rel (%p9) target = $region8
  $region5: #{forward.9} parent=0 // loop_body
    %s13 = ssub.s32 %s8, 1
    %s14 = ssub.s32 %s8, 2
    %s21 = sadd.s32 1, %s16
    %p22 = scmp.ge.s32.totalorder %s21, 9
    %s23 = scalar_select %p22, 0, %s21
    %s24 = sadd.s32 1, %s15
    %s25 = scalar_select %p22, %s24, %s15
    %p26 = scmp.ge.s32.totalorder %s25, 1
    %s27 = scalar_select %p26, 0, %s25
    %s28 = ssub.s32 %s16, %s23
    %p29 = scmp.eq.s32.totalorder %s28, 0
    %s31 = sadd.s32 %s30, 1
    %s32 = scalar_select %p29, %s30, %s31
    %p35 = pneg %p29
    %p36 = scmp.eq.s32.totalorder %s8, 8
    %p37 = por %p35, %p36
    %p38 = scmp.ne.s32.totalorder %s30, %s33
    %p39 = scmp.eq.s32.totalorder %s8, 0
    %p40 = por %p38, %p39
    %p41 = scmp.ne.s32.totalorder %s30, %s33
    %p42 = scmp.eq.s32.totalorder %s13, 8
    %p43 = por %p41, %p42
    %p44 = scmp.ne.s32.totalorder %s33, %s34
    %p45 = scmp.eq.s32.totalorder %s13, 0
    %p46 = por %p44, %p45
    %p47 = scmp.ne.s32.totalorder %s33, %s34
    %p48 = scmp.eq.s32.totalorder %s14, 8
    %p49 = por %p47, %p48
    %p51 = scmp.ne.s32.totalorder %s34, %s50
    %p52 = scmp.eq.s32.totalorder %s14, 0
    %p53 = por %p51, %p52
    %s54 = ssub.s32 %s15, %s27
    %p55 = scmp.eq.s32.totalorder %s54, 0
    %s57 = sadd.s32 %s56, 1
    %s58 = scalar_select %p55, %s56, %s57
    %p61 = pneg %p55
    %p62 = scmp.eq.s32.totalorder %s8, 8
    %p63 = por %p61, %p62
    %p64 = scmp.ne.s32.totalorder %s56, %s59
    %p65 = scmp.eq.s32.totalorder %s8, 0
    %p66 = por %p64, %p65
    %p67 = scmp.ne.s32.totalorder %s56, %s59
    %p68 = scmp.eq.s32.totalorder %s13, 8
    %p69 = por %p67, %p68
    %p70 = scmp.ne.s32.totalorder %s59, %s60
    %p71 = scmp.eq.s32.totalorder %s13, 0
    %p72 = por %p70, %p71
    %p73 = scmp.ne.s32.totalorder %s59, %s60
    %p74 = scmp.eq.s32.totalorder %s14, 8
    %p75 = por %p73, %p74
    %p77 = scmp.ne.s32.totalorder %s60, %s76
    %p78 = scmp.eq.s32.totalorder %s14, 0
    %p79 = por %p77, %p78
    %s80 = ssub.s32 %s16, %s23
    %s81 = ssub.s32 %s15, %s27
    %s82 = sor.u32 %s80, %s81
    %p83 = scmp.eq.s32.totalorder %s82, 0
    %s85 = sadd.s32 %s84, 1
    %s86 = scalar_select %p83, %s84, %s85
    %p89 = pneg %p83
    %p90 = scmp.eq.s32.totalorder %s8, 8
    %p91 = por %p89, %p90
    %p92 = scmp.ne.s32.totalorder %s84, %s87
    %p93 = scmp.eq.s32.totalorder %s8, 0
    %p94 = por %p92, %p93
    %p95 = scmp.ne.s32.totalorder %s84, %s87
    %p96 = scmp.eq.s32.totalorder %s13, 8
    %p97 = por %p95, %p96
    %p98 = scmp.ne.s32.totalorder %s87, %s88
    %p99 = scmp.eq.s32.totalorder %s13, 0
    %p100 = por %p98, %p99
    %p101 = scmp.ne.s32.totalorder %s87, %s88
    %p102 = scmp.eq.s32.totalorder %s14, 8
    %p103 = por %p101, %p102
    %p105 = scmp.ne.s32.totalorder %s88, %s104
    %p106 = scmp.eq.s32.totalorder %s14, 0
    %p107 = por %p105, %p106
    %p108 = scmp.le.s32.totalorder 1, %s8
    %p109 = scmp.lt.s32.totalorder %s8, 10
    %p110 = pnand %p108, %p109
    %p111 = pneg %p110
    // Predicated region
    $region9: #{forward.9} parent=5 // pred_check
      _
    $region10: #{forward.9} parent=5 // pred_check_branch
      %113 = sbr.rel (%p110) target = $region12
    $region11: #{forward.9} parent=5 // pred_region
      %s114 = ssub.s32 %s8, 1
      // Predicated region
      $region13: #{forward.9} parent=11 // pred_check
        %p115 = pneg %p72
      $region14: #{forward.9} parent=11 // pred_check_branch
        %117 = sbr.rel (%p115) target = $region16
      $region15: #{forward.9} parent=11 // pred_region
        %p118 = scmp.lt.s32.totalorder %s17, 0
        %s119 = scalar_select %p118, %s17, 0
        %s120 = smul.addr %s119, 4
        %s121 = scalar_lea.vmem %s1, %s120
      $region16: #{forward.9} parent=11 // pred_fallthru
        _
    $region12: #{forward.9} parent=5 // pred_fallthru
      _
    %p122 = scmp.lt.s32.totalorder %s8, 9
    // Predicated region
    $region17: #{forward.9} parent=5 // pred_check
      %p123 = pneg %p122
    $region18: #{forward.9} parent=5 // pred_check_branch
      %125 = sbr.rel (%p123) target = $region20
    $region19: #{forward.9} parent=5 // pred_region
      // Predicated region
      $region21: #{forward.9} parent=19 // pred_check
        %p126 = pneg %p40
      $region22: #{forward.9} parent=19 // pred_check_branch
        %128 = sbr.rel (%p126) target = $region24
      $region23: #{forward.9} parent=19 // pred_region
        %s129 = smul.u32 32, %s16
        %p130 = scmp.lt.s32.totalorder %s129, 287
        %s131 = scalar_select %p130, %s129, 287
        %s132 = smul.addr %s131, 4
        %s133 = scalar_lea.vmem %s0, %s132
        %s134 = smul.u32 32, %s16
      $region24: #{forward.9} parent=19 // pred_fallthru
        _
    $region20: #{forward.9} parent=5 // pred_fallthru
      _
    %p135 = scmp.le.s32.totalorder 1, %s8
    %p136 = scmp.lt.s32.totalorder %s8, 10
    %p137 = pnand %p135, %p136
    %p138 = pneg %p137
    // Predicated region
    $region25: #{forward.9} parent=5 // pred_check
      _
    $region26: #{forward.9} parent=5 // pred_check_branch
      %140 = sbr.rel (%p137) target = $region28
    $region27: #{forward.9} parent=5 // pred_region
      %s141 = ssub.s32 %s8, 1
      %s142 = smul.u32 32, %s18
      %p143 = scmp.lt.s32.totalorder %s142, 287
      %s144 = scalar_select %p143, %s142, 287
      %s145 = smul.addr %s144, 4
      %s146 = scalar_lea.vmem %s0, %s145
      %p147 = pneg %p46
      %p148 = pneg %p43
      %p149 = scmp.lt.s32.totalorder %s17, 0
      %s150 = scalar_select %p149, %s17, 0
      %s151 = smul.addr %s150, 4
      %s152 = scalar_lea.vmem %s1, %s151
      %p153 = pneg %p72
      %p154 = pneg %p69
      %p155 = pneg %p100
      %p156 = pneg %p97
      %s157 = smul.u32 32, %s18
      %p158 = scmp.lt.s32.totalorder %s157, 287
      %s159 = scalar_select %p158, %s157, 287
      %p160 = scmp.lt.s32.totalorder %s17, 0
      %s161 = scalar_select %p160, %s17, 0
      %s162 = sadd.s32 %s161, %s159
      %s163 = smul.addr %s162, 4
      %s164 = scalar_lea.vmem %s2, %s163
      %s165 = smul.u32 32, %s18
      %p166 = scmp.lt.s32.totalorder %s165, 287
      %s167 = scalar_select %p166, %s165, 287
      %s168 = smul.addr %s167, 4
      %s169 = scalar_lea.vmem %s0, %s168
      %s170 = smul.u32 32, %s18
      %p171 = scmp.lt.s32.totalorder %s17, 0
      %s172 = scalar_select %p171, %s17, 0
      %s173 = smul.addr %s172, 4
      %s174 = scalar_lea.vmem %s1, %s173
      %s175 = smul.u32 32, %s18
      %p176 = scmp.lt.s32.totalorder %s175, 287
      %s177 = scalar_select %p176, %s175, 287
      %p178 = scmp.lt.s32.totalorder %s17, 0
      %s179 = scalar_select %p178, %s17, 0
      %s180 = sadd.s32 %s179, %s177
      %s181 = smul.addr %s180, 4
      %s182 = scalar_lea.vmem %s2, %s181
      %s183 = smul.u32 32, %s18
      %v185 = vld [vmem:[%s169] sm:$0xf]
      %v186 = vld [vmem:[%s169 + $0x4] sm:$0xf]
      %v187 = vld [vmem:[%s169 + $0x8] sm:$0xf]
      %v188 = vld [vmem:[%s169 + $0xc] sm:$0xf]
      %v189 = vld [vmem:[%s169 + $0x10] sm:$0xf]
      %v190 = vld [vmem:[%s169 + $0x14] sm:$0xf]
      %v191 = vld [vmem:[%s169 + $0x18] sm:$0xf]
      %v192 = vld [vmem:[%s169 + $0x1c] sm:$0xf]
      %v193 = vld [vmem:[%s169 + $0x20] sm:$0xf]
      %v194 = vld [vmem:[%s169 + $0x24] sm:$0xf]
      %v195 = vld [vmem:[%s169 + $0x28] sm:$0xf]
      %v196 = vld [vmem:[%s169 + $0x2c] sm:$0xf]
      %v197 = vld [vmem:[%s169 + $0x30] sm:$0xf]
      %v198 = vld [vmem:[%s169 + $0x34] sm:$0xf]
      %v199 = vld [vmem:[%s169 + $0x38] sm:$0xf]
      %v200 = vld [vmem:[%s169 + $0x3c] sm:$0xf]
      %v201 = vld [vmem:[%s169 + $0x40] sm:$0xf]
      %v202 = vld [vmem:[%s169 + $0x44] sm:$0xf]
      %v203 = vld [vmem:[%s169 + $0x48] sm:$0xf]
      %v204 = vld [vmem:[%s169 + $0x4c] sm:$0xf]
      %v205 = vld [vmem:[%s169 + $0x50] sm:$0xf]
      %v206 = vld [vmem:[%s169 + $0x54] sm:$0xf]
      %v207 = vld [vmem:[%s169 + $0x58] sm:$0xf]
      %v208 = vld [vmem:[%s169 + $0x5c] sm:$0xf]
      %v209 = vld [vmem:[%s169 + $0x60] sm:$0xf]
      %v210 = vld [vmem:[%s169 + $0x64] sm:$0xf]
      %v211 = vld [vmem:[%s169 + $0x68] sm:$0xf]
      %v212 = vld [vmem:[%s169 + $0x6c] sm:$0xf]
      %v213 = vld [vmem:[%s169 + $0x70] sm:$0xf]
      %v214 = vld [vmem:[%s169 + $0x74] sm:$0xf]
      %v215 = vld [vmem:[%s169 + $0x78] sm:$0xf]
      %v216 = vld [vmem:[%s169 + $0x7c] sm:$0xf]
      %v217 = vld [vmem:[%s174] sm:$0xf]
      %v218 = vld [vmem:[%s174 + $0x4] sm:$0xf]
      %v219 = vld [vmem:[%s174 + $0x8] sm:$0xf]
      %v220 = vld [vmem:[%s174 + $0xc] sm:$0xf]
      %v253 = vunpack.c.l.b16 %v185
      %v254 = vunpack.c.l.b16 %v186
      %v255 = vunpack.c.l.b16 %v187
      %v256 = vunpack.c.l.b16 %v188
      %v257 = vunpack.c.l.b16 %v189
      %v258 = vunpack.c.l.b16 %v190
      %v259 = vunpack.c.l.b16 %v191
      %v260 = vunpack.c.l.b16 %v192
      %v261 = vunpack.c.l.b16 %v193
      %v262 = vunpack.c.l.b16 %v194
      %v263 = vunpack.c.l.b16 %v195
      %v264 = vunpack.c.l.b16 %v196
      %v265 = vunpack.c.l.b16 %v197
      %v266 = vunpack.c.l.b16 %v198
      %v267 = vunpack.c.l.b16 %v199
      %v268 = vunpack.c.l.b16 %v200
      %v269 = vunpack.c.l.b16 %v201
      %v270 = vunpack.c.l.b16 %v202
      %v271 = vunpack.c.l.b16 %v203
      %v272 = vunpack.c.l.b16 %v204
      %v273 = vunpack.c.l.b16 %v205
      %v274 = vunpack.c.l.b16 %v206
      %v275 = vunpack.c.l.b16 %v207
      %v276 = vunpack.c.l.b16 %v208
      %v277 = vunpack.c.l.b16 %v209
      %v278 = vunpack.c.l.b16 %v210
      %v279 = vunpack.c.l.b16 %v211
      %v280 = vunpack.c.l.b16 %v212
      %v281 = vunpack.c.l.b16 %v213
      %v282 = vunpack.c.l.b16 %v214
      %v283 = vunpack.c.l.b16 %v215
      %v284 = vunpack.c.l.b16 %v216
      %v285 = vpack.c.b16 %v254, %v253
      %v286 = vpack.c.b16 %v256, %v255
      %v287 = vpack.c.b16 %v258, %v257
      %v288 = vpack.c.b16 %v260, %v259
      %v289 = vpack.c.b16 %v262, %v261
      %v290 = vpack.c.b16 %v264, %v263
      %v291 = vpack.c.b16 %v266, %v265
      %v292 = vpack.c.b16 %v268, %v267
      %v293 = vpack.c.b16 %v270, %v269
      %v294 = vpack.c.b16 %v272, %v271
      %v295 = vpack.c.b16 %v274, %v273
      %v296 = vpack.c.b16 %v276, %v275
      %v297 = vpack.c.b16 %v278, %v277
      %v298 = vpack.c.b16 %v280, %v279
      %v299 = vpack.c.b16 %v282, %v281
      %v300 = vpack.c.b16 %v284, %v283
      %v305 = vunpack.c.l.b16 %v217
      %v306 = vunpack.c.l.b16 %v218
      %v307 = vunpack.c.l.b16 %v219
      %v308 = vunpack.c.l.b16 %v220
      %v309 = vpack.c.b16 %v306, %v305
      %v310 = vpack.c.b16 %v308, %v307
      %vm313 = vcmask 261120
      %v315 = vsel %vm313, %v285, 0
      %v318 = vsel %vm313, %v286, 0
      %v321 = vsel %vm313, %v287, 0
      %v324 = vsel %vm313, %v288, 0
      %v327 = vsel %vm313, %v289, 0
      %v330 = vsel %vm313, %v290, 0
      %v333 = vsel %vm313, %v291, 0
      %v336 = vsel %vm313, %v292, 0
      %v339 = vsel %vm313, %v293, 0
      %v342 = vsel %vm313, %v294, 0
      %v345 = vsel %vm313, %v295, 0
      %v348 = vsel %vm313, %v296, 0
      %v351 = vsel %vm313, %v297, 0
      %v354 = vsel %vm313, %v298, 0
      %v357 = vsel %vm313, %v299, 0
      %v360 = vsel %vm313, %v300, 0
      %362 = vmatprep.subr.bf16.mxu0 0
      %363 = vmatpush1.bf16.msra.mxu0 %v309
      %364 = vmatprep.subr.bf16.mxu0 0
      %365 = vmatpush1.bf16.msra.mxu0 %v310
      %366 = vmatprep.subr.bf16.mxu0 0
      %367 = vmatpush1.bf16.msra.mxu0 0
      %368 = vmatprep.subr.bf16.mxu0 0
      %369 = vmatpush1.bf16.msra.mxu0 0
      %370 = vmatprep.subr.bf16.mxu0 0
      %371 = vmatpush1.bf16.msra.mxu0 0
      %372 = vmatprep.subr.bf16.mxu0 0
      %373 = vmatpush1.bf16.msra.mxu0 0
      %374 = vmatprep.subr.bf16.mxu0 0
      %375 = vmatpush1.bf16.msra.mxu0 0
      %376 = vmatprep.subr.bf16.mxu0 0
      %377 = vmatpush1.bf16.msra.mxu0 0
      %378 = vmatprep.subr.bf16.mxu0 0
      %379 = vmatpush1.bf16.msra.mxu0 0
      %380 = vmatprep.subr.bf16.mxu0 0
      %381 = vmatpush1.bf16.msra.mxu0 0
      %382 = vmatprep.subr.bf16.mxu0 0
      %383 = vmatpush1.bf16.msra.mxu0 0
      %384 = vmatprep.subr.bf16.mxu0 0
      %385 = vmatpush1.bf16.msra.mxu0 0
      %386 = vmatprep.subr.bf16.mxu0 0
      %387 = vmatpush1.bf16.msra.mxu0 0
      %388 = vmatprep.subr.bf16.mxu0 0
      %389 = vmatpush1.bf16.msra.mxu0 0
      %390 = vmatprep.subr.bf16.mxu0 0
      %391 = vmatpush1.bf16.msra.mxu0 0
      %392 = vmatprep.subr.bf16.mxu0 0
      %393 = vmatpush1.bf16.msra.mxu0 0
      %394 = vmatprep.mubr.bf16.mxu0 0
      %395 = vmatmul.mubr.bf16.gmra.mrb[0].mxu0 %v315
      %v396 = vpop.f32.mrb[0].mxu0
      %v397 = vadd.f32 0.0, %v396
      %v398 = vpop.f32.mrb[0].mxu0
      %v399 = vpop.f32.mrb[0].mxu0
      %v400 = vadd.f32 0.0, %v399
      %v401 = vpop.f32.mrb[0].mxu0
      %402 = vmatprep.mubr.bf16.mxu0 0
      %403 = vmatmul.mubr.bf16.gmra.mrb[0].mxu0 %v318
      %v404 = vpop.f32.mrb[0].mxu0
      %v405 = vadd.f32 0.0, %v404
      %v406 = vpop.f32.mrb[0].mxu0
      %v407 = vpop.f32.mrb[0].mxu0
      %v408 = vadd.f32 0.0, %v407
      %v409 = vpop.f32.mrb[0].mxu0
      %410 = vmatprep.mubr.bf16.mxu0 0
      %411 = vmatmul.mubr.bf16.gmra.mrb[0].mxu0 %v321
      %v412 = vpop.f32.mrb[0].mxu0
      %v413 = vadd.f32 0.0, %v412
      %v414 = vpop.f32.mrb[0].mxu0
      %v415 = vpop.f32.mrb[0].mxu0
      %v416 = vadd.f32 0.0, %v415
      %v417 = vpop.f32.mrb[0].mxu0
      %418 = vmatprep.mubr.bf16.mxu0 0
      %419 = vmatmul.mubr.bf16.gmra.mrb[0].mxu0 %v324
      %v420 = vpop.f32.mrb[0].mxu0
      %v421 = vadd.f32 0.0, %v420
      %v422 = vpop.f32.mrb[0].mxu0
      %v423 = vpop.f32.mrb[0].mxu0
      %v424 = vadd.f32 0.0, %v423
      %v425 = vpop.f32.mrb[0].mxu0
      %426 = vmatprep.mubr.bf16.mxu0 0
      %427 = vmatmul.mubr.bf16.gmra.mrb[0].mxu0 %v327
      %v428 = vpop.f32.mrb[0].mxu0
      %v429 = vadd.f32 0.0, %v428
      %v430 = vpop.f32.mrb[0].mxu0
      %v431 = vpop.f32.mrb[0].mxu0
      %v432 = vadd.f32 0.0, %v431
      %v433 = vpop.f32.mrb[0].mxu0
      %434 = vmatprep.mubr.bf16.mxu0 0
      %435 = vmatmul.mubr.bf16.gmra.mrb[0].mxu0 %v330
      %v436 = vpop.f32.mrb[0].mxu0
      %v437 = vadd.f32 0.0, %v436
      %v438 = vpop.f32.mrb[0].mxu0
      %v439 = vpop.f32.mrb[0].mxu0
      %v440 = vadd.f32 0.0, %v439
      %v441 = vpop.f32.mrb[0].mxu0
      %442 = vmatprep.mubr.bf16.mxu0 0
      %443 = vmatmul.mubr.bf16.gmra.mrb[0].mxu0 %v333
      %v444 = vpop.f32.mrb[0].mxu0
      %v445 = vadd.f32 0.0, %v444
      %v446 = vpop.f32.mrb[0].mxu0
      %v447 = vpop.f32.mrb[0].mxu0
      %v448 = vadd.f32 0.0, %v447
      %v449 = vpop.f32.mrb[0].mxu0
      %450 = vmatprep.mubr.bf16.mxu0 0
      %451 = vmatmul.mubr.bf16.gmra.mrb[0].mxu0 %v336
      %v452 = vpop.f32.mrb[0].mxu0
      %v453 = vadd.f32 0.0, %v452
      %v454 = vpop.f32.mrb[0].mxu0
      %v455 = vpop.f32.mrb[0].mxu0
      %v456 = vadd.f32 0.0, %v455
      %v457 = vpop.f32.mrb[0].mxu0
      %458 = vmatprep.mubr.bf16.mxu0 0
      %459 = vmatmul.mubr.bf16.gmra.mrb[0].mxu0 %v339
      %v460 = vpop.f32.mrb[0].mxu0
      %v461 = vadd.f32 0.0, %v460
      %v462 = vpop.f32.mrb[0].mxu0
      %v463 = vpop.f32.mrb[0].mxu0
      %v464 = vadd.f32 0.0, %v463
      %v465 = vpop.f32.mrb[0].mxu0
      %466 = vmatprep.mubr.bf16.mxu0 0
      %467 = vmatmul.mubr.bf16.gmra.mrb[0].mxu0 %v342
      %v468 = vpop.f32.mrb[0].mxu0
      %v469 = vadd.f32 0.0, %v468
      %v470 = vpop.f32.mrb[0].mxu0
      %v471 = vpop.f32.mrb[0].mxu0
      %v472 = vadd.f32 0.0, %v471
      %v473 = vpop.f32.mrb[0].mxu0
      %474 = vmatprep.mubr.bf16.mxu0 0
      %475 = vmatmul.mubr.bf16.gmra.mrb[0].mxu0 %v345
      %v476 = vpop.f32.mrb[0].mxu0
      %v477 = vadd.f32 0.0, %v476
      %v478 = vpop.f32.mrb[0].mxu0
      %v479 = vpop.f32.mrb[0].mxu0
      %v480 = vadd.f32 0.0, %v479
      %v481 = vpop.f32.mrb[0].mxu0
      %482 = vmatprep.mubr.bf16.mxu0 0
      %483 = vmatmul.mubr.bf16.gmra.mrb[0].mxu0 %v348
      %v484 = vpop.f32.mrb[0].mxu0
      %v485 = vadd.f32 0.0, %v484
      %v486 = vpop.f32.mrb[0].mxu0
      %v487 = vpop.f32.mrb[0].mxu0
      %v488 = vadd.f32 0.0, %v487
      %v489 = vpop.f32.mrb[0].mxu0
      %490 = vmatprep.mubr.bf16.mxu0 0
      %491 = vmatmul.mubr.bf16.gmra.mrb[0].mxu0 %v351
      %v492 = vpop.f32.mrb[0].mxu0
      %v493 = vadd.f32 0.0, %v492
      %v494 = vpop.f32.mrb[0].mxu0
      %v495 = vpop.f32.mrb[0].mxu0
      %v496 = vadd.f32 0.0, %v495
      %v497 = vpop.f32.mrb[0].mxu0
      %498 = vmatprep.mubr.bf16.mxu0 0
      %499 = vmatmul.mubr.bf16.gmra.mrb[0].mxu0 %v354
      %v500 = vpop.f32.mrb[0].mxu0
      %v501 = vadd.f32 0.0, %v500
      %v502 = vpop.f32.mrb[0].mxu0
      %v503 = vpop.f32.mrb[0].mxu0
      %v504 = vadd.f32 0.0, %v503
      %v505 = vpop.f32.mrb[0].mxu0
      %506 = vmatprep.mubr.bf16.mxu0 0
      %507 = vmatmul.mubr.bf16.gmra.mrb[0].mxu0 %v357
      %v508 = vpop.f32.mrb[0].mxu0
      %v509 = vadd.f32 0.0, %v508
      %v510 = vpop.f32.mrb[0].mxu0
      %v511 = vpop.f32.mrb[0].mxu0
      %v512 = vadd.f32 0.0, %v511
      %v513 = vpop.f32.mrb[0].mxu0
      %514 = vmatprep.mubr.bf16.mxu0 0
      %515 = vmatmul.mubr.bf16.gmra.mrb[0].mxu0 %v360
      %v516 = vpop.f32.mrb[0].mxu0
      %v517 = vadd.f32 0.0, %v516
      %v518 = vpop.f32.mrb[0].mxu0
      %v519 = vpop.f32.mrb[0].mxu0
      %v520 = vadd.f32 0.0, %v519
      %v521 = vpop.f32.mrb[0].mxu0
      %522 = vdwg.mxu0
      %v523 = vpack.c.bf16 %v400, %v397
      %v524 = vpack.c.bf16 %v408, %v405
      %v525 = vpack.c.bf16 %v416, %v413
      %v526 = vpack.c.bf16 %v424, %v421
      %v527 = vpack.c.bf16 %v432, %v429
      %v528 = vpack.c.bf16 %v440, %v437
      %v529 = vpack.c.bf16 %v448, %v445
      %v530 = vpack.c.bf16 %v456, %v453
      %v531 = vpack.c.bf16 %v464, %v461
      %v532 = vpack.c.bf16 %v472, %v469
      %v533 = vpack.c.bf16 %v480, %v477
      %v534 = vpack.c.bf16 %v488, %v485
      %v535 = vpack.c.bf16 %v496, %v493
      %v536 = vpack.c.bf16 %v504, %v501
      %v537 = vpack.c.bf16 %v512, %v509
      %v538 = vpack.c.bf16 %v520, %v517
      %v555 = vunpack.c.l.b16 %v523
      %v556 = vunpack.c.h.b16 %v523
      %v557 = vunpack.c.l.b16 %v524
      %v558 = vunpack.c.h.b16 %v524
      %v559 = vunpack.c.l.b16 %v525
      %v560 = vunpack.c.h.b16 %v525
      %v561 = vunpack.c.l.b16 %v526
      %v562 = vunpack.c.h.b16 %v526
      %v563 = vunpack.c.l.b16 %v527
      %v564 = vunpack.c.h.b16 %v527
      %v565 = vunpack.c.l.b16 %v528
      %v566 = vunpack.c.h.b16 %v528
      %v567 = vunpack.c.l.b16 %v529
      %v568 = vunpack.c.h.b16 %v529
      %v569 = vunpack.c.l.b16 %v530
      %v570 = vunpack.c.h.b16 %v530
      %v571 = vunpack.c.l.b16 %v531
      %v572 = vunpack.c.h.b16 %v531
      %v573 = vunpack.c.l.b16 %v532
      %v574 = vunpack.c.h.b16 %v532
      %v575 = vunpack.c.l.b16 %v533
      %v576 = vunpack.c.h.b16 %v533
      %v577 = vunpack.c.l.b16 %v534
      %v578 = vunpack.c.h.b16 %v534
      %v579 = vunpack.c.l.b16 %v535
      %v580 = vunpack.c.h.b16 %v535
      %v581 = vunpack.c.l.b16 %v536
      %v582 = vunpack.c.h.b16 %v536
      %v583 = vunpack.c.l.b16 %v537
      %v584 = vunpack.c.h.b16 %v537
      %v585 = vunpack.c.l.b16 %v538
      %v586 = vunpack.c.h.b16 %v538
      %v587 = vpack.c.b16 %v555, %v555
      %v588 = vpack.c.b16 %v556, %v556
      %v589 = vpack.c.b16 %v557, %v557
      %v590 = vpack.c.b16 %v558, %v558
      %v591 = vpack.c.b16 %v559, %v559
      %v592 = vpack.c.b16 %v560, %v560
      %v593 = vpack.c.b16 %v561, %v561
      %v594 = vpack.c.b16 %v562, %v562
      %v595 = vpack.c.b16 %v563, %v563
      %v596 = vpack.c.b16 %v564, %v564
      %v597 = vpack.c.b16 %v565, %v565
      %v598 = vpack.c.b16 %v566, %v566
      %v599 = vpack.c.b16 %v567, %v567
      %v600 = vpack.c.b16 %v568, %v568
      %v601 = vpack.c.b16 %v569, %v569
      %v602 = vpack.c.b16 %v570, %v570
      %v603 = vpack.c.b16 %v571, %v571
      %v604 = vpack.c.b16 %v572, %v572
      %v605 = vpack.c.b16 %v573, %v573
      %v606 = vpack.c.b16 %v574, %v574
      %v607 = vpack.c.b16 %v575, %v575
      %v608 = vpack.c.b16 %v576, %v576
      %v609 = vpack.c.b16 %v577, %v577
      %v610 = vpack.c.b16 %v578, %v578
      %v611 = vpack.c.b16 %v579, %v579
      %v612 = vpack.c.b16 %v580, %v580
      %v613 = vpack.c.b16 %v581, %v581
      %v614 = vpack.c.b16 %v582, %v582
      %v615 = vpack.c.b16 %v583, %v583
      %v616 = vpack.c.b16 %v584, %v584
      %v617 = vpack.c.b16 %v585, %v585
      %v618 = vpack.c.b16 %v586, %v586
      %651 = vst [vmem:[%s182] sm:$0xf] %v587
      %652 = vst [vmem:[%s182 + $0x4] sm:$0xf] %v588
      %653 = vst [vmem:[%s182 + $0x8] sm:$0xf] %v589
      %654 = vst [vmem:[%s182 + $0xc] sm:$0xf] %v590
      %655 = vst [vmem:[%s182 + $0x10] sm:$0xf] %v591
      %656 = vst [vmem:[%s182 + $0x14] sm:$0xf] %v592
      %657 = vst [vmem:[%s182 + $0x18] sm:$0xf] %v593
      %658 = vst [vmem:[%s182 + $0x1c] sm:$0xf] %v594
      %659 = vst [vmem:[%s182 + $0x20] sm:$0xf] %v595
      %660 = vst [vmem:[%s182 + $0x24] sm:$0xf] %v596
      %661 = vst [vmem:[%s182 + $0x28] sm:$0xf] %v597
      %662 = vst [vmem:[%s182 + $0x2c] sm:$0xf] %v598
      %663 = vst [vmem:[%s182 + $0x30] sm:$0xf] %v599
      %664 = vst [vmem:[%s182 + $0x34] sm:$0xf] %v600
      %665 = vst [vmem:[%s182 + $0x38] sm:$0xf] %v601
      %666 = vst [vmem:[%s182 + $0x3c] sm:$0xf] %v602
      %667 = vst [vmem:[%s182 + $0x40] sm:$0xf] %v603
      %668 = vst [vmem:[%s182 + $0x44] sm:$0xf] %v604
      %669 = vst [vmem:[%s182 + $0x48] sm:$0xf] %v605
      %670 = vst [vmem:[%s182 + $0x4c] sm:$0xf] %v606
      %671 = vst [vmem:[%s182 + $0x50] sm:$0xf] %v607
      %672 = vst [vmem:[%s182 + $0x54] sm:$0xf] %v608
      %673 = vst [vmem:[%s182 + $0x58] sm:$0xf] %v609
      %674 = vst [vmem:[%s182 + $0x5c] sm:$0xf] %v610
      %675 = vst [vmem:[%s182 + $0x60] sm:$0xf] %v611
      %676 = vst [vmem:[%s182 + $0x64] sm:$0xf] %v612
      %677 = vst [vmem:[%s182 + $0x68] sm:$0xf] %v613
      %678 = vst [vmem:[%s182 + $0x6c] sm:$0xf] %v614
      %679 = vst [vmem:[%s182 + $0x70] sm:$0xf] %v615
      %680 = vst [vmem:[%s182 + $0x74] sm:$0xf] %v616
      %681 = vst [vmem:[%s182 + $0x78] sm:$0xf] %v617
      %682 = vst [vmem:[%s182 + $0x7c] sm:$0xf] %v618
      %s683 = smul.u32 32, %s18
      %p684 = scmp.lt.s32.totalorder %s683, 287
      %s685 = scalar_select %p684, %s683, 287
      %p686 = scmp.lt.s32.totalorder %s17, 0
      %s687 = scalar_select %p686, %s17, 0
      %s688 = sadd.s32 %s687, %s685
      %s689 = smul.addr %s688, 4
      %s690 = scalar_lea.vmem %s2, %s689
      // Predicated region
      $region29: #{forward.9} parent=27 // pred_check
        %p691 = pneg %p97
      $region30: #{forward.9} parent=27 // pred_check_branch
        %693 = sbr.rel (%p691) target = $region32
      $region31: #{forward.9} parent=27 // pred_region
        %s694 = smul.u32 32, %s18
      $region32: #{forward.9} parent=27 // pred_fallthru
        _
    $region28: #{forward.9} parent=5 // pred_fallthru
      _
    %p695 = scmp.le.s32.totalorder 2, %s8
    // Predicated region
    $region33: #{forward.9} parent=5 // pred_check
      %p696 = pneg %p695
    $region34: #{forward.9} parent=5 // pred_check_branch
      %698 = sbr.rel (%p696) target = $region36
    $region35: #{forward.9} parent=5 // pred_region
      %s699 = ssub.s32 %s8, 2
      // Predicated region
      $region37: #{forward.9} parent=35 // pred_check
        %p700 = pneg %p103
      $region38: #{forward.9} parent=35 // pred_check_branch
        %702 = sbr.rel (%p700) target = $region40
      $region39: #{forward.9} parent=35 // pred_region
        %s703 = smul.u32 32, %s20
        %p704 = scmp.lt.s32.totalorder %s703, 287
        %s705 = scalar_select %p704, %s703, 287
        %p706 = scmp.lt.s32.totalorder %s19, 0
        %s707 = scalar_select %p706, %s19, 0
        %s708 = sadd.s32 %s707, %s705
        %s709 = smul.addr %s708, 4
        %s710 = scalar_lea.vmem %s2, %s709
      $region40: #{forward.9} parent=35 // pred_fallthru
        _
    $region36: #{forward.9} parent=5 // pred_fallthru
      _
  $region6: #{forward.9} parent=0 // loop_footer
    %s12 = sadd.s32 1, %s8
  $region7: #{forward.9} parent=0 // loop_footer_branch
    %7 = sbr.rel target = $region3
  $region8: #{forward.9} parent=0 // loop_exit
    _

</llo_original>
